<compile_context>
chip_gen: v7x
topology: tpu7x:2x2x1
jax: 0.10.0
libtpu: 0.0.40
codegen_flags: <defaults>
</compile_context>

<pallas_src>
import functools

import numpy as np
import jax
import jax.numpy as jnp
from jax.experimental import pallas as pl
from jax.experimental.pallas import tpu as pltpu


# ----------------------------------------------------------------------------
# Fused kernel: 6 x (Conv1d+BN+PSN) with folded pools + FC head, one batch block per step
# ----------------------------------------------------------------------------
def _net_kernel(x_ref, wconv_ref, pwconv_ref, bconv_ref,
                w1_ref, pwfc_ref, bfc_ref, mavg_ref, w2_ref, b2_ref,
                o_ref, *, n_stages):
    z = x_ref[...]                                                        # (Bb*T, 128) f32
    for i in range(n_stages):
        # Conv1d(k=3,p=1,no-bias) + BN scale (stage 3 also folds the preceding AvgPool1d(2)):
        # one block-tridiagonal (128,128) MXU matmul, lane-dense.
        y = jnp.dot(z, wconv_ref[i], preferred_element_type=jnp.float32)
        # PSN time-mix as a single MXU matmul with kron(I_Bb, W_T); BN shift + PSN bias folded.
        h = jnp.dot(pwconv_ref[i], y, preferred_element_type=jnp.float32) + bconv_ref[i]
        z = (h >= 0.0).astype(jnp.float32)                                # heaviside (ATan fwd)

    # FC head: AvgPool1d(2) + Flatten + Linear1 folded into one matmul, then PSN, mean_T, Linear2.
    a = jnp.dot(z, w1_ref[...], preferred_element_type=jnp.float32)       # (Bb*T, 128)
    hf = jnp.dot(pwfc_ref[...], a, preferred_element_type=jnp.float32) + bfc_ref[...]
    sp = (hf >= 0.0).astype(jnp.float32)
    m = jnp.dot(mavg_ref[...], sp, preferred_element_type=jnp.float32)    # (Bb, 128) mean over T
    o_ref[0] = jnp.dot(m, w2_ref[...], preferred_element_type=jnp.float32) + b2_ref[...]


# ----------------------------------------------------------------------------
# Host-side layout helpers (constants built once with numpy)
# ----------------------------------------------------------------------------
def _expand_conv(w, scale, L):
    """Conv1d(k=3,p=1,no-bias) + BN scale as a block-tridiagonal (L*Cin, L*Cout) matrix.

    Lane order is l*C + c; y[lo*Cout+co] = sum_{li,ci} x[li*Cin+ci] * We[li*Cin+ci, lo*Cout+co].
    """
    Cout, Cin, _ = w.shape
    ws = w * scale[:, None, None]
    We = np.zeros((L * Cin, L * Cout), np.float32)
    for lo in range(L):
        for k in range(3):
            li = lo + k - 1
            if 0 <= li < L:
                We[li * Cin:(li + 1) * Cin, lo * Cout:(lo + 1) * Cout] = ws[:, :, k].T
    return We


def _pool_mat(L, C):
    """AvgPool1d(2) along l in the (l*C + c) lane order, as an (L*C, (L/2)*C) matrix."""
    P = np.zeros((L * C, (L // 2) * C), np.float32)
    for lp in range(L // 2):
        for c in range(C):
            P[(2 * lp) * C + c, lp * C + c] = 0.5
            P[(2 * lp + 1) * C + c, lp * C + c] = 0.5
    return P


def pack_params(params, *, channels, T, class_num, L0, Bb, eps=1e-5):
    """Fold BN / pools / flatten / biases into 9 packed kernel constants."""
    assert L0 == 32, "fc hard-codes Linear(channels*8, ...) which requires H == 32"
    C = channels
    BT = Bb * T
    f_pad = max(128, ((max(L0 * C, L0 * 3) + 127) // 128) * 128)
    I_Bb = np.eye(Bb, dtype=np.float32)

    def g(a):
        return np.asarray(a, np.float32)

    w_conv = np.zeros((6, f_pad, f_pad), np.float32)
    pw_conv = np.zeros((6, BT, BT), np.float32)
    b_conv = np.zeros((6, BT, f_pad), np.float32)

    pool1 = _pool_mat(L0, C)                               # folds the pool after stage 2 into stage 3
    for i, st in enumerate(params["stages"]):
        w, gamma, beta = g(st["w"]), g(st["gamma"]), g(st["beta"])
        rmean, rvar = g(st["rmean"]), g(st["rvar"])
        scale = gamma / np.sqrt(rvar + eps)
        shift = beta - rmean * scale
        L = L0 if i < 3 else L0 // 2                       # conv length at this stage
        We = _expand_conv(w, scale, L)
        if i == 3:
            We = pool1 @ We                                # AvgPool1d(2) folded in
        kin, kout = We.shape
        w_conv[i, :kin, :kout] = We

        pw = g(st["pw"])
        pw_conv[i] = np.kron(I_Bb, pw)
        rowsum = pw.sum(axis=1)                            # (T,)
        shift_f = np.tile(shift[None, :], (L, 1)).reshape(-1)          # (L*C,), lane order l*C+c
        bias_tf = rowsum[:, None] * shift_f[None, :] + g(st["pb"])[:, None]  # (T, L*C)
        b_conv[i, :, :L * C] = np.tile(bias_tf, (Bb, 1))

    # FC head: AvgPool1d(2) + Flatten(c*Lf+l order) + Linear1, folded into one matrix.
    Lf = L0 // 4
    hid = channels * 8 // 4
    pool2 = _pool_mat(L0 // 2, C)                          # (16*C, 8*C)
    w1 = g(params["w1"])                                   # (hid, C*Lf), torch feature = c*Lf + l
    w1_lc = np.zeros((Lf * C, hid), np.float32)
    for l in range(Lf):
        for c in range(C):
            w1_lc[l * C + c, :] = w1[:, c * Lf + l]
    w1_fold = pool2 @ w1_lc                                # (16*C, hid)
    w1_pad = np.zeros((f_pad, f_pad), np.float32)
    w1_pad[:(L0 // 2) * C, :hid] = w1_fold

    pwfc = g(params["pwfc"])
    pwfc_blk = np.kron(I_Bb, pwfc)
    rowsum_fc = pwfc.sum(axis=1)
    bias_fc = rowsum_fc[:, None] * g(params["b1"])[None, :] + g(params["pbfc"])[:, None]
    b_fc = np.zeros((BT, f_pad), np.float32)
    b_fc[:, :hid] = np.tile(bias_fc, (Bb, 1))

    mavg = np.kron(I_Bb, np.full((1, T), 1.0 / T, np.float32))          # (Bb, Bb*T)

    w2, b2 = g(params["w2"]), g(params["b2"])
    w2_pad = np.zeros((f_pad, f_pad), np.float32)
    w2_pad[:hid, :class_num] = w2.T
    b2_pad = np.zeros((1, f_pad), np.float32)
    b2_pad[0, :class_num] = b2

    return dict(
        w_conv=jnp.asarray(w_conv), pw_conv=jnp.asarray(pw_conv), b_conv=jnp.asarray(b_conv),
        w1=jnp.asarray(w1_pad), pw_fc=jnp.asarray(pwfc_blk), b_fc=jnp.asarray(b_fc),
        m_avg=jnp.asarray(mavg), w2=jnp.asarray(w2_pad), b2=jnp.asarray(b2_pad),
    )


def _pack_input(x_nchw, T, f_pad):
    """[B,3,H,W] -> permute(0,3,1,2) -> rows (b*T+t), lanes (l*Cin + c), zero-padded to f_pad."""
    B, Cin, H, W = x_nchw.shape
    xt = jnp.transpose(x_nchw, (0, 3, 2, 1)).astype(jnp.float32)        # (B, T, L, C)
    xf = xt.reshape(B * T, H * Cin)
    return jnp.pad(xf, ((0, 0), (0, f_pad - H * Cin)))


# ----------------------------------------------------------------------------
# pallas_call wrapper
# ----------------------------------------------------------------------------
def _const_spec(a):
    nd = a.ndim
    zero = (0,) * nd
    return pl.BlockSpec(a.shape, lambda i: zero)


def cifar10net_forward(x_nchw, packed, *, T, class_num, Bb):
    B, Cin, H, W = x_nchw.shape
    assert W == T and H == 32 and B % Bb == 0
    f_pad = packed["w_conv"].shape[-1]
    BT = Bb * T
    nb = B // Bb

    xp = _pack_input(x_nchw, T, f_pad)                                   # (B*T, f_pad) f32

    consts = [packed[k] for k in ("w_conv", "pw_conv", "b_conv",
                                  "w1", "pw_fc", "b_fc", "m_avg", "w2", "b2")]
    in_specs = [pl.BlockSpec((BT, f_pad), lambda i: (i, 0))] + [_const_spec(a) for a in consts]

    out = pl.pallas_call(
        functools.partial(_net_kernel, n_stages=6),
        out_shape=jax.ShapeDtypeStruct((nb, Bb, f_pad), jnp.float32),
        grid=(nb,),
        in_specs=in_specs,
        out_specs=pl.BlockSpec((1, Bb, f_pad), lambda i: (i, 0, 0)),
        compiler_params=pltpu.CompilerParams(
            dimension_semantics=("parallel",),
            vmem_limit_bytes=32 * 1024 * 1024),
    )(xp, *consts)
    return out.reshape(B, f_pad)[:, :class_num]


# ----------------------------------------------------------------------------
# Deterministic synthetic parameters (torch-equivalent logical params)
# ----------------------------------------------------------------------------
def init_params(key, channels, T, class_num, L0=32):
    keys = iter(jax.random.split(key, 48))
    stages = []
    in_ch = 3
    for _blk in range(2):
        for _j in range(3):
            w = jax.random.normal(next(keys), (channels, in_ch, 3), jnp.float32) \
                * (1.0 / jnp.sqrt(in_ch * 3.0))
            gamma = 1.0 + 0.1 * jax.random.normal(next(keys), (channels,), jnp.float32)
            beta = 0.1 * jax.random.normal(next(keys), (channels,), jnp.float32)
            rmean = 0.1 * jax.random.normal(next(keys), (channels,), jnp.float32)
            rvar = jnp.abs(1.0 + 0.1 * jax.random.normal(next(keys), (channels,), jnp.float32))
            pw = jax.random.uniform(next(keys), (T, T), jnp.float32, -1.0, 1.0) / jnp.sqrt(1.0 * T)
            stages.append(dict(w=w, gamma=gamma, beta=beta, rmean=rmean, rvar=rvar,
                               pw=pw, pb=jnp.full((T,), -1.0, jnp.float32)))
            in_ch = channels

    Lf = L0 // 4
    Fdim = channels * Lf                     # == channels*8 for L0 == 32
    hid = channels * 8 // 4
    w1 = jax.random.normal(next(keys), (hid, Fdim), jnp.float32) / jnp.sqrt(1.0 * Fdim)
    b1 = 0.1 * jax.random.normal(next(keys), (hid,), jnp.float32)
    pwfc = jax.random.uniform(next(keys), (T, T), jnp.float32, -1.0, 1.0) / jnp.sqrt(1.0 * T)
    pbfc = jnp.full((T,), -1.0, jnp.float32)
    w2 = jax.random.normal(next(keys), (class_num, hid), jnp.float32) / jnp.sqrt(1.0 * hid)
    b2 = 0.1 * jax.random.normal(next(keys), (class_num,), jnp.float32)
    return dict(stages=stages, w1=w1, b1=b1, pwfc=pwfc, pbfc=pbfc, w2=w2, b2=b2)


# ----------------------------------------------------------------------------
if __name__ == "__main__":
    # H must be 32 (fc hard-codes channels*8 after two /2 pools); W == T (sequence length).
    B, CIN, H, W = 8, 3, 32, 8
    CHANNELS, T, CLASS_NUM = 4, 8, 10
    Bb = 4                                   # batch block per grid step -> grid = (B // Bb,)

    key = jax.random.PRNGKey(0)
    kx, kp = jax.random.split(key)
    x = jax.random.normal(kx, (B, CIN, H, W), jnp.float32)

    params = init_params(kp, CHANNELS, T, CLASS_NUM, L0=H)
    packed = pack_params(params, channels=CHANNELS, T=T, class_num=CLASS_NUM, L0=H, Bb=Bb)

    out = cifar10net_forward(x, packed, T=T, class_num=CLASS_NUM, Bb=Bb)
    out = jax.block_until_ready(out)
    assert out.shape == (B, CLASS_NUM), out.shape
    print("KERNEL_OK")
</pallas_src>

<mosaic_0001>
module attributes {stable_mosaic.version = 11 : i64} {
  func.func @_net_kernel(%arg0: i32, %arg1: memref<32x128xf32, #tpu.memory_space<vmem>>, %arg2: memref<6x128x128xf32, #tpu.memory_space<vmem>>, %arg3: memref<6x32x32xf32, #tpu.memory_space<vmem>>, %arg4: memref<6x32x128xf32, #tpu.memory_space<vmem>>, %arg5: memref<128x128xf32, #tpu.memory_space<vmem>>, %arg6: memref<32x32xf32, #tpu.memory_space<vmem>>, %arg7: memref<32x128xf32, #tpu.memory_space<vmem>>, %arg8: memref<4x32xf32, #tpu.memory_space<vmem>>, %arg9: memref<128x128xf32, #tpu.memory_space<vmem>>, %arg10: memref<1x128xf32, #tpu.memory_space<vmem>>, %arg11: memref<1x4x128xf32, #tpu.memory_space<vmem>>) attributes {dimension_semantics = [#tpu.dimension_semantics<parallel>], iteration_bounds = array<i64: 2>, scalar_prefetch = 0 : i64, scratch_operands = 0 : i64, tpu.core_type = #tpu.core_type<tc>, window_params = [{transform_indices = @transform_0, window_bounds = array<i64: 32, 128>}, {pipeline_mode = #tpu.pipeline_mode<synchronous>, transform_indices = @transform_1, window_bounds = array<i64: 6, 128, 128>}, {pipeline_mode = #tpu.pipeline_mode<synchronous>, transform_indices = @transform_2, window_bounds = array<i64: 6, 32, 32>}, {pipeline_mode = #tpu.pipeline_mode<synchronous>, transform_indices = @transform_3, window_bounds = array<i64: 6, 32, 128>}, {pipeline_mode = #tpu.pipeline_mode<synchronous>, transform_indices = @transform_4, window_bounds = array<i64: 128, 128>}, {pipeline_mode = #tpu.pipeline_mode<synchronous>, transform_indices = @transform_5, window_bounds = array<i64: 32, 32>}, {pipeline_mode = #tpu.pipeline_mode<synchronous>, transform_indices = @transform_6, window_bounds = array<i64: 32, 128>}, {pipeline_mode = #tpu.pipeline_mode<synchronous>, transform_indices = @transform_7, window_bounds = array<i64: 4, 32>}, {pipeline_mode = #tpu.pipeline_mode<synchronous>, transform_indices = @transform_8, window_bounds = array<i64: 128, 128>}, {pipeline_mode = #tpu.pipeline_mode<synchronous>, transform_indices = @transform_9, window_bounds = array<i64: 1, 128>}, {transform_indices = @transform_10, window_bounds = array<i64: 1, 4, 128>}]} {
    %c0 = arith.constant 0 : index
    %c0_0 = arith.constant 0 : index
    %0 = vector.load %arg1[%c0, %c0_0] : memref<32x128xf32, #tpu.memory_space<vmem>>, vector<32x128xf32>
    %c0_1 = arith.constant 0 : index
    %c0_2 = arith.constant 0 : index
    %c0_3 = arith.constant 0 : index
    %1 = vector.load %arg2[%c0_1, %c0_2, %c0_3] : memref<6x128x128xf32, #tpu.memory_space<vmem>>, vector<1x128x128xf32>
    %2 = vector.shape_cast %1 : vector<1x128x128xf32> to vector<128x128xf32>
    %cst = arith.constant dense<0.000000e+00> : vector<32x128xf32>
    %3 = tpu.matmul %0, %2, %cst {dimension_numbers = #tpu.dot_dimension_numbers<[1], [0], [0], [1], [0, 0, 1, 1], [], []>} : vector<32x128xf32>, vector<128x128xf32>, vector<32x128xf32> -> vector<32x128xf32>
    %c0_4 = arith.constant 0 : index
    %c0_5 = arith.constant 0 : index
    %c0_6 = arith.constant 0 : index
    %4 = vector.load %arg3[%c0_4, %c0_5, %c0_6] : memref<6x32x32xf32, #tpu.memory_space<vmem>>, vector<1x32x32xf32>
    %5 = vector.shape_cast %4 : vector<1x32x32xf32> to vector<32x32xf32>
    %cst_7 = arith.constant dense<0.000000e+00> : vector<32x128xf32>
    %6 = tpu.matmul %5, %3, %cst_7 {dimension_numbers = #tpu.dot_dimension_numbers<[1], [0], [0], [1], [0, 0, 1, 1], [], []>} : vector<32x32xf32>, vector<32x128xf32>, vector<32x128xf32> -> vector<32x128xf32>
    %c0_8 = arith.constant 0 : index
    %c0_9 = arith.constant 0 : index
    %c0_10 = arith.constant 0 : index
    %7 = vector.load %arg4[%c0_8, %c0_9, %c0_10] : memref<6x32x128xf32, #tpu.memory_space<vmem>>, vector<1x32x128xf32>
    %8 = vector.shape_cast %7 : vector<1x32x128xf32> to vector<32x128xf32>
    %9 = arith.addf %6, %8 : vector<32x128xf32>
    %cst_11 = arith.constant 0.000000e+00 : f32
    %10 = vector.broadcast %cst_11 : f32 to vector<32x128xf32>
    %11 = arith.cmpf oge, %9, %10 : vector<32x128xf32>
    %12 = arith.extui %11 : vector<32x128xi1> to vector<32x128xi32>
    %13 = arith.sitofp %12 : vector<32x128xi32> to vector<32x128xf32>
    %c1 = arith.constant 1 : index
    %c0_12 = arith.constant 0 : index
    %c0_13 = arith.constant 0 : index
    %14 = vector.load %arg2[%c1, %c0_12, %c0_13] : memref<6x128x128xf32, #tpu.memory_space<vmem>>, vector<1x128x128xf32>
    %15 = vector.shape_cast %14 : vector<1x128x128xf32> to vector<128x128xf32>
    %cst_14 = arith.constant dense<0.000000e+00> : vector<32x128xf32>
    %16 = tpu.matmul %13, %15, %cst_14 {dimension_numbers = #tpu.dot_dimension_numbers<[1], [0], [0], [1], [0, 0, 1, 1], [], []>} : vector<32x128xf32>, vector<128x128xf32>, vector<32x128xf32> -> vector<32x128xf32>
    %c1_15 = arith.constant 1 : index
    %c0_16 = arith.constant 0 : index
    %c0_17 = arith.constant 0 : index
    %17 = vector.load %arg3[%c1_15, %c0_16, %c0_17] : memref<6x32x32xf32, #tpu.memory_space<vmem>>, vector<1x32x32xf32>
    %18 = vector.shape_cast %17 : vector<1x32x32xf32> to vector<32x32xf32>
    %cst_18 = arith.constant dense<0.000000e+00> : vector<32x128xf32>
    %19 = tpu.matmul %18, %16, %cst_18 {dimension_numbers = #tpu.dot_dimension_numbers<[1], [0], [0], [1], [0, 0, 1, 1], [], []>} : vector<32x32xf32>, vector<32x128xf32>, vector<32x128xf32> -> vector<32x128xf32>
    %c1_19 = arith.constant 1 : index
    %c0_20 = arith.constant 0 : index
    %c0_21 = arith.constant 0 : index
    %20 = vector.load %arg4[%c1_19, %c0_20, %c0_21] : memref<6x32x128xf32, #tpu.memory_space<vmem>>, vector<1x32x128xf32>
    %21 = vector.shape_cast %20 : vector<1x32x128xf32> to vector<32x128xf32>
    %22 = arith.addf %19, %21 : vector<32x128xf32>
    %cst_22 = arith.constant 0.000000e+00 : f32
    %23 = vector.broadcast %cst_22 : f32 to vector<32x128xf32>
    %24 = arith.cmpf oge, %22, %23 : vector<32x128xf32>
    %25 = arith.extui %24 : vector<32x128xi1> to vector<32x128xi32>
    %26 = arith.sitofp %25 : vector<32x128xi32> to vector<32x128xf32>
    %c2 = arith.constant 2 : index
    %c0_23 = arith.constant 0 : index
    %c0_24 = arith.constant 0 : index
    %27 = vector.load %arg2[%c2, %c0_23, %c0_24] : memref<6x128x128xf32, #tpu.memory_space<vmem>>, vector<1x128x128xf32>
    %28 = vector.shape_cast %27 : vector<1x128x128xf32> to vector<128x128xf32>
    %cst_25 = arith.constant dense<0.000000e+00> : vector<32x128xf32>
    %29 = tpu.matmul %26, %28, %cst_25 {dimension_numbers = #tpu.dot_dimension_numbers<[1], [0], [0], [1], [0, 0, 1, 1], [], []>} : vector<32x128xf32>, vector<128x128xf32>, vector<32x128xf32> -> vector<32x128xf32>
    %c2_26 = arith.constant 2 : index
    %c0_27 = arith.constant 0 : index
    %c0_28 = arith.constant 0 : index
    %30 = vector.load %arg3[%c2_26, %c0_27, %c0_28] : memref<6x32x32xf32, #tpu.memory_space<vmem>>, vector<1x32x32xf32>
    %31 = vector.shape_cast %30 : vector<1x32x32xf32> to vector<32x32xf32>
    %cst_29 = arith.constant dense<0.000000e+00> : vector<32x128xf32>
    %32 = tpu.matmul %31, %29, %cst_29 {dimension_numbers = #tpu.dot_dimension_numbers<[1], [0], [0], [1], [0, 0, 1, 1], [], []>} : vector<32x32xf32>, vector<32x128xf32>, vector<32x128xf32> -> vector<32x128xf32>
    %c2_30 = arith.constant 2 : index
    %c0_31 = arith.constant 0 : index
    %c0_32 = arith.constant 0 : index
    %33 = vector.load %arg4[%c2_30, %c0_31, %c0_32] : memref<6x32x128xf32, #tpu.memory_space<vmem>>, vector<1x32x128xf32>
    %34 = vector.shape_cast %33 : vector<1x32x128xf32> to vector<32x128xf32>
    %35 = arith.addf %32, %34 : vector<32x128xf32>
    %cst_33 = arith.constant 0.000000e+00 : f32
    %36 = vector.broadcast %cst_33 : f32 to vector<32x128xf32>
    %37 = arith.cmpf oge, %35, %36 : vector<32x128xf32>
    %38 = arith.extui %37 : vector<32x128xi1> to vector<32x128xi32>
    %39 = arith.sitofp %38 : vector<32x128xi32> to vector<32x128xf32>
    %c3 = arith.constant 3 : index
    %c0_34 = arith.constant 0 : index
    %c0_35 = arith.constant 0 : index
    %40 = vector.load %arg2[%c3, %c0_34, %c0_35] : memref<6x128x128xf32, #tpu.memory_space<vmem>>, vector<1x128x128xf32>
    %41 = vector.shape_cast %40 : vector<1x128x128xf32> to vector<128x128xf32>
    %cst_36 = arith.constant dense<0.000000e+00> : vector<32x128xf32>
    %42 = tpu.matmul %39, %41, %cst_36 {dimension_numbers = #tpu.dot_dimension_numbers<[1], [0], [0], [1], [0, 0, 1, 1], [], []>} : vector<32x128xf32>, vector<128x128xf32>, vector<32x128xf32> -> vector<32x128xf32>
    %c3_37 = arith.constant 3 : index
    %c0_38 = arith.constant 0 : index
    %c0_39 = arith.constant 0 : index
    %43 = vector.load %arg3[%c3_37, %c0_38, %c0_39] : memref<6x32x32xf32, #tpu.memory_space<vmem>>, vector<1x32x32xf32>
    %44 = vector.shape_cast %43 : vector<1x32x32xf32> to vector<32x32xf32>
    %cst_40 = arith.constant dense<0.000000e+00> : vector<32x128xf32>
    %45 = tpu.matmul %44, %42, %cst_40 {dimension_numbers = #tpu.dot_dimension_numbers<[1], [0], [0], [1], [0, 0, 1, 1], [], []>} : vector<32x32xf32>, vector<32x128xf32>, vector<32x128xf32> -> vector<32x128xf32>
    %c3_41 = arith.constant 3 : index
    %c0_42 = arith.constant 0 : index
    %c0_43 = arith.constant 0 : index
    %46 = vector.load %arg4[%c3_41, %c0_42, %c0_43] : memref<6x32x128xf32, #tpu.memory_space<vmem>>, vector<1x32x128xf32>
    %47 = vector.shape_cast %46 : vector<1x32x128xf32> to vector<32x128xf32>
    %48 = arith.addf %45, %47 : vector<32x128xf32>
    %cst_44 = arith.constant 0.000000e+00 : f32
    %49 = vector.broadcast %cst_44 : f32 to vector<32x128xf32>
    %50 = arith.cmpf oge, %48, %49 : vector<32x128xf32>
    %51 = arith.extui %50 : vector<32x128xi1> to vector<32x128xi32>
    %52 = arith.sitofp %51 : vector<32x128xi32> to vector<32x128xf32>
    %c4 = arith.constant 4 : index
    %c0_45 = arith.constant 0 : index
    %c0_46 = arith.constant 0 : index
    %53 = vector.load %arg2[%c4, %c0_45, %c0_46] : memref<6x128x128xf32, #tpu.memory_space<vmem>>, vector<1x128x128xf32>
    %54 = vector.shape_cast %53 : vector<1x128x128xf32> to vector<128x128xf32>
    %cst_47 = arith.constant dense<0.000000e+00> : vector<32x128xf32>
    %55 = tpu.matmul %52, %54, %cst_47 {dimension_numbers = #tpu.dot_dimension_numbers<[1], [0], [0], [1], [0, 0, 1, 1], [], []>} : vector<32x128xf32>, vector<128x128xf32>, vector<32x128xf32> -> vector<32x128xf32>
    %c4_48 = arith.constant 4 : index
    %c0_49 = arith.constant 0 : index
    %c0_50 = arith.constant 0 : index
    %56 = vector.load %arg3[%c4_48, %c0_49, %c0_50] : memref<6x32x32xf32, #tpu.memory_space<vmem>>, vector<1x32x32xf32>
    %57 = vector.shape_cast %56 : vector<1x32x32xf32> to vector<32x32xf32>
    %cst_51 = arith.constant dense<0.000000e+00> : vector<32x128xf32>
    %58 = tpu.matmul %57, %55, %cst_51 {dimension_numbers = #tpu.dot_dimension_numbers<[1], [0], [0], [1], [0, 0, 1, 1], [], []>} : vector<32x32xf32>, vector<32x128xf32>, vector<32x128xf32> -> vector<32x128xf32>
    %c4_52 = arith.constant 4 : index
    %c0_53 = arith.constant 0 : index
    %c0_54 = arith.constant 0 : index
    %59 = vector.load %arg4[%c4_52, %c0_53, %c0_54] : memref<6x32x128xf32, #tpu.memory_space<vmem>>, vector<1x32x128xf32>
    %60 = vector.shape_cast %59 : vector<1x32x128xf32> to vector<32x128xf32>
    %61 = arith.addf %58, %60 : vector<32x128xf32>
    %cst_55 = arith.constant 0.000000e+00 : f32
    %62 = vector.broadcast %cst_55 : f32 to vector<32x128xf32>
    %63 = arith.cmpf oge, %61, %62 : vector<32x128xf32>
    %64 = arith.extui %63 : vector<32x128xi1> to vector<32x128xi32>
    %65 = arith.sitofp %64 : vector<32x128xi32> to vector<32x128xf32>
    %c5 = arith.constant 5 : index
    %c0_56 = arith.constant 0 : index
    %c0_57 = arith.constant 0 : index
    %66 = vector.load %arg2[%c5, %c0_56, %c0_57] : memref<6x128x128xf32, #tpu.memory_space<vmem>>, vector<1x128x128xf32>
    %67 = vector.shape_cast %66 : vector<1x128x128xf32> to vector<128x128xf32>
    %cst_58 = arith.constant dense<0.000000e+00> : vector<32x128xf32>
    %68 = tpu.matmul %65, %67, %cst_58 {dimension_numbers = #tpu.dot_dimension_numbers<[1], [0], [0], [1], [0, 0, 1, 1], [], []>} : vector<32x128xf32>, vector<128x128xf32>, vector<32x128xf32> -> vector<32x128xf32>
    %c5_59 = arith.constant 5 : index
    %c0_60 = arith.constant 0 : index
    %c0_61 = arith.constant 0 : index
    %69 = vector.load %arg3[%c5_59, %c0_60, %c0_61] : memref<6x32x32xf32, #tpu.memory_space<vmem>>, vector<1x32x32xf32>
    %70 = vector.shape_cast %69 : vector<1x32x32xf32> to vector<32x32xf32>
    %cst_62 = arith.constant dense<0.000000e+00> : vector<32x128xf32>
    %71 = tpu.matmul %70, %68, %cst_62 {dimension_numbers = #tpu.dot_dimension_numbers<[1], [0], [0], [1], [0, 0, 1, 1], [], []>} : vector<32x32xf32>, vector<32x128xf32>, vector<32x128xf32> -> vector<32x128xf32>
    %c5_63 = arith.constant 5 : index
    %c0_64 = arith.constant 0 : index
    %c0_65 = arith.constant 0 : index
    %72 = vector.load %arg4[%c5_63, %c0_64, %c0_65] : memref<6x32x128xf32, #tpu.memory_space<vmem>>, vector<1x32x128xf32>
    %73 = vector.shape_cast %72 : vector<1x32x128xf32> to vector<32x128xf32>
    %74 = arith.addf %71, %73 : vector<32x128xf32>
    %cst_66 = arith.constant 0.000000e+00 : f32
    %75 = vector.broadcast %cst_66 : f32 to vector<32x128xf32>
    %76 = arith.cmpf oge, %74, %75 : vector<32x128xf32>
    %77 = arith.extui %76 : vector<32x128xi1> to vector<32x128xi32>
    %78 = arith.sitofp %77 : vector<32x128xi32> to vector<32x128xf32>
    %c0_67 = arith.constant 0 : index
    %c0_68 = arith.constant 0 : index
    %79 = vector.load %arg5[%c0_67, %c0_68] : memref<128x128xf32, #tpu.memory_space<vmem>>, vector<128x128xf32>
    %cst_69 = arith.constant dense<0.000000e+00> : vector<32x128xf32>
    %80 = tpu.matmul %78, %79, %cst_69 {dimension_numbers = #tpu.dot_dimension_numbers<[1], [0], [0], [1], [0, 0, 1, 1], [], []>} : vector<32x128xf32>, vector<128x128xf32>, vector<32x128xf32> -> vector<32x128xf32>
    %c0_70 = arith.constant 0 : index
    %c0_71 = arith.constant 0 : index
    %81 = vector.load %arg6[%c0_70, %c0_71] : memref<32x32xf32, #tpu.memory_space<vmem>>, vector<32x32xf32>
    %cst_72 = arith.constant dense<0.000000e+00> : vector<32x128xf32>
    %82 = tpu.matmul %81, %80, %cst_72 {dimension_numbers = #tpu.dot_dimension_numbers<[1], [0], [0], [1], [0, 0, 1, 1], [], []>} : vector<32x32xf32>, vector<32x128xf32>, vector<32x128xf32> -> vector<32x128xf32>
    %c0_73 = arith.constant 0 : index
    %c0_74 = arith.constant 0 : index
    %83 = vector.load %arg7[%c0_73, %c0_74] : memref<32x128xf32, #tpu.memory_space<vmem>>, vector<32x128xf32>
    %84 = arith.addf %82, %83 : vector<32x128xf32>
    %cst_75 = arith.constant 0.000000e+00 : f32
    %85 = vector.broadcast %cst_75 : f32 to vector<32x128xf32>
    %86 = arith.cmpf oge, %84, %85 : vector<32x128xf32>
    %87 = arith.extui %86 : vector<32x128xi1> to vector<32x128xi32>
    %88 = arith.sitofp %87 : vector<32x128xi32> to vector<32x128xf32>
    %c0_76 = arith.constant 0 : index
    %c0_77 = arith.constant 0 : index
    %89 = vector.load %arg8[%c0_76, %c0_77] : memref<4x32xf32, #tpu.memory_space<vmem>>, vector<4x32xf32>
    %cst_78 = arith.constant dense<0.000000e+00> : vector<4x128xf32>
    %90 = tpu.matmul %89, %88, %cst_78 {dimension_numbers = #tpu.dot_dimension_numbers<[1], [0], [0], [1], [0, 0, 1, 1], [], []>} : vector<4x32xf32>, vector<32x128xf32>, vector<4x128xf32> -> vector<4x128xf32>
    %c0_79 = arith.constant 0 : index
    %c0_80 = arith.constant 0 : index
    %91 = vector.load %arg9[%c0_79, %c0_80] : memref<128x128xf32, #tpu.memory_space<vmem>>, vector<128x128xf32>
    %cst_81 = arith.constant dense<0.000000e+00> : vector<4x128xf32>
    %92 = tpu.matmul %90, %91, %cst_81 {dimension_numbers = #tpu.dot_dimension_numbers<[1], [0], [0], [1], [0, 0, 1, 1], [], []>} : vector<4x128xf32>, vector<128x128xf32>, vector<4x128xf32> -> vector<4x128xf32>
    %c0_82 = arith.constant 0 : index
    %c0_83 = arith.constant 0 : index
    %93 = vector.load %arg10[%c0_82, %c0_83] : memref<1x128xf32, #tpu.memory_space<vmem>>, vector<1x128xf32>
    %94 = vector.broadcast %93 : vector<1x128xf32> to vector<4x128xf32>
    %95 = arith.addf %92, %94 : vector<4x128xf32>
    %c0_84 = arith.constant 0 : index
    %c0_85 = arith.constant 0 : index
    %c0_86 = arith.constant 0 : index
    %96 = vector.load %arg11[%c0_84, %c0_85, %c0_86] : memref<1x4x128xf32, #tpu.memory_space<vmem>>, vector<1x4x128xf32>
    %97 = vector.shape_cast %96 : vector<1x4x128xf32> to vector<4x128xf32>
    %98 = vector.shape_cast %95 : vector<4x128xf32> to vector<1x4x128xf32>
    tpu.vector_store %arg11[%c0_84, %c0_85, %c0_86], %98 {strides = array<i32>} : memref<1x4x128xf32, #tpu.memory_space<vmem>>, vector<1x4x128xf32>,
    return
  }
  func.func @transform_0(%arg0: i32) -> (i32, i32) {
    %c0_i32 = arith.constant 0 : i32
    %c0_i32_0 = arith.constant 0 : i32
    return %arg0, %c0_i32 : i32, i32
  }
  func.func @transform_1(%arg0: i32) -> (i32, i32, i32) {
    %c0_i32 = arith.constant 0 : i32
    %c0_i32_0 = arith.constant 0 : i32
    %c0_i32_1 = arith.constant 0 : i32
    %c0_i32_2 = arith.constant 0 : i32
    return %c0_i32, %c0_i32_0, %c0_i32_1 : i32, i32, i32
  }
  func.func @transform_2(%arg0: i32) -> (i32, i32, i32) {
    %c0_i32 = arith.constant 0 : i32
    %c0_i32_0 = arith.constant 0 : i32
    %c0_i32_1 = arith.constant 0 : i32
    %c0_i32_2 = arith.constant 0 : i32
    return %c0_i32, %c0_i32_0, %c0_i32_1 : i32, i32, i32
  }
  func.func @transform_3(%arg0: i32) -> (i32, i32, i32) {
    %c0_i32 = arith.constant 0 : i32
    %c0_i32_0 = arith.constant 0 : i32
    %c0_i32_1 = arith.constant 0 : i32
    %c0_i32_2 = arith.constant 0 : i32
    return %c0_i32, %c0_i32_0, %c0_i32_1 : i32, i32, i32
  }
  func.func @transform_4(%arg0: i32) -> (i32, i32) {
    %c0_i32 = arith.constant 0 : i32
    %c0_i32_0 = arith.constant 0 : i32
    %c0_i32_1 = arith.constant 0 : i32
    return %c0_i32, %c0_i32_0 : i32, i32
  }
  func.func @transform_5(%arg0: i32) -> (i32, i32) {
    %c0_i32 = arith.constant 0 : i32
    %c0_i32_0 = arith.constant 0 : i32
    %c0_i32_1 = arith.constant 0 : i32
    return %c0_i32, %c0_i32_0 : i32, i32
  }
  func.func @transform_6(%arg0: i32) -> (i32, i32) {
    %c0_i32 = arith.constant 0 : i32
    %c0_i32_0 = arith.constant 0 : i32
    %c0_i32_1 = arith.constant 0 : i32
    return %c0_i32, %c0_i32_0 : i32, i32
  }
  func.func @transform_7(%arg0: i32) -> (i32, i32) {
    %c0_i32 = arith.constant 0 : i32
    %c0_i32_0 = arith.constant 0 : i32
    %c0_i32_1 = arith.constant 0 : i32
    return %c0_i32, %c0_i32_0 : i32, i32
  }
  func.func @transform_8(%arg0: i32) -> (i32, i32) {
    %c0_i32 = arith.constant 0 : i32
    %c0_i32_0 = arith.constant 0 : i32
    %c0_i32_1 = arith.constant 0 : i32
    return %c0_i32, %c0_i32_0 : i32, i32
  }
  func.func @transform_9(%arg0: i32) -> (i32, i32) {
    %c0_i32 = arith.constant 0 : i32
    %c0_i32_0 = arith.constant 0 : i32
    %c0_i32_1 = arith.constant 0 : i32
    return %c0_i32, %c0_i32_0 : i32, i32
  }
  func.func @transform_10(%arg0: i32) -> (i32, i32, i32) {
    %c0_i32 = arith.constant 0 : i32
    %c0_i32_0 = arith.constant 0 : i32
    %c0_i32_1 = arith.constant 0 : i32
    return %arg0, %c0_i32, %c0_i32_0 : i32, i32, i32
  }
}

</mosaic_0001>

<llo_original>
// kernel: tpu_custom_call.1
$region0: #{tpu_custom_call.1}
  #allocation0 [shape = 'u32[]', space=smem, size = 0x4, offset = 0x4, fixed_abs, tag = 'smem constant byte address 0x4 - core index']
  #allocation1 [shape = 'u32[144,128]{1,0:T(1,128)}', space=vmem, size = 0x12000, scoped, tag = 'internal scratch']
  %s0 = inlined_call_operand.hbm [shape: f32[64,128], index: 0, kind: input, shape index: {}]
  %s1 = inlined_call_operand.hbm [shape: f32[6,128,128], index: 1, kind: input, shape index: {}]
  %s2 = inlined_call_operand.hbm [shape: f32[6,32,32], index: 2, kind: input, shape index: {}]
  %s3 = inlined_call_operand.hbm [shape: f32[6,32,128], index: 3, kind: input, shape index: {}]
  %s4 = inlined_call_operand.hbm [shape: f32[128,128], index: 4, kind: input, shape index: {}]
  %s5 = inlined_call_operand.hbm [shape: f32[32,32], index: 5, kind: input, shape index: {}]
  %s6 = inlined_call_operand.hbm [shape: f32[32,128], index: 6, kind: input, shape index: {}]
  %s7 = inlined_call_operand.vmem [shape: f32[4,32], index: 7, kind: input, shape index: {}]
  %s8 = inlined_call_operand.hbm [shape: f32[128,128], index: 8, kind: input, shape index: {}]
  %s9 = inlined_call_operand.vmem [shape: f32[1,128], index: 9, kind: input, shape index: {}]
  %s10 = inlined_call_operand.hbm [shape: f32[2,4,128], index: 10, kind: output, shape index: {}]
  %s11 = sld [smem:[#allocation0]]
  $region105: #{tpu_custom_call.1} parent=0
    _
  %s13 = ssub.s32 1, %s11
  %s14 = scalar_select 0, %s13, %s11
  $region1: #{tpu_custom_call.1} parent=0
    #allocation2 [shape = 'u8[32768]{0}', space=vmem, size = 0x8000, scoped, tag = 'input window, operand 0']
    #allocation3 [shape = 's32[2]{0}', space=sflag, size = 0x8, scoped, tag = 'scoped memory for tpu_custom_call.1']
    #allocation4 [shape = 's32[2]{0}', space=sflag, size = 0x8, scoped, tag = 'scoped memory for tpu_custom_call.1']
    #allocation5 [shape = 'u8[393216]{0}', space=vmem, size = 0x60000, scoped, tag = 'input window, operand 1, single buffered']
    #allocation6 [shape = 's32[1]{0}', space=sflag, size = 0x4, scoped, tag = 'scoped memory for tpu_custom_call.1']
    #allocation7 [shape = 'u8[98304]{0}', space=vmem, size = 0x18000, scoped, tag = 'input window, operand 2, single buffered']
    #allocation8 [shape = 'u8[98304]{0}', space=vmem, size = 0x18000, scoped, tag = 'input window, operand 3, single buffered']
    #allocation9 [shape = 's32[1]{0}', space=sflag, size = 0x4, scoped, tag = 'scoped memory for tpu_custom_call.1']
    #allocation10 [shape = 'u8[65536]{0}', space=vmem, size = 0x10000, scoped, tag = 'input window, operand 4, single buffered']
    #allocation11 [shape = 'u8[16384]{0}', space=vmem, size = 0x4000, scoped, tag = 'input window, operand 5, single buffered']
    #allocation12 [shape = 's32[1]{0}', space=sflag, size = 0x4, scoped, tag = 'scoped memory for tpu_custom_call.1']
    #allocation13 [shape = 'u8[16384]{0}', space=vmem, size = 0x4000, scoped, tag = 'input window, operand 6, single buffered']
    #allocation14 [shape = 'u8[65536]{0}', space=vmem, size = 0x10000, scoped, tag = 'input window, operand 8, single buffered']
    #allocation15 [shape = 's32[1]{0}', space=sflag, size = 0x4, scoped, tag = 'scoped memory for tpu_custom_call.1']
    #allocation16 [shape = 'u8[4096]{0}', space=vmem, size = 0x1000, scoped, tag = 'output window, operand 0']
    %15 = vsyncpa [#allocation3], 0
    %s16 = scalar_lea.sflag [#allocation3], 1
    %17 = vsyncpa %s16, 0
    %18 = vsyncpa [#allocation6], 0
    %19 = vsyncpa [#allocation9], 0
    %20 = vsyncpa [#allocation12], 0
    %21 = vsyncpa [#allocation15], 0
    %22 = vsyncpa [#allocation4], 0
    %s23 = scalar_lea.sflag [#allocation4], 1
    %24 = vsyncpa %s23, 0
    loop: start=0, step=1, limit=4
    $region2: #{tpu_custom_call.1} parent=1 // loop_pre_header
      _
    $region3: #{tpu_custom_call.1} parent=1 // loop_header
      %s26 = sphi 0, %s30
      %p27 = scmp.ge.s32.totalorder %s26, 4
      %s36 = sphi 0, %s38
      %s39 = sphi 0, %s36
      %s40 = sphi 0, %s39
      %s56 = sphi 0, %s40
      %s60 = sphi 0, %s60
      %s62 = sphi 0, %s60
      %s63 = sphi 0, %s62
      %s77 = sphi 0, %s63
      %s81 = sphi 0, %s81
      %s83 = sphi 0, %s81
      %s84 = sphi 0, %s83
      %s98 = sphi 0, %s84
      %s102 = sphi 0, %s102
      %s104 = sphi 0, %s102
      %s105 = sphi 0, %s104
      %s119 = sphi 0, %s105
      %s123 = sphi 0, %s123
      %s125 = sphi 0, %s123
      %s126 = sphi 0, %s125
      %s140 = sphi 0, %s126
      %s144 = sphi 0, %s144
      %s146 = sphi 0, %s144
      %s147 = sphi 0, %s146
      %s161 = sphi 0, %s147
      %s165 = sphi 0, %s165
      %s167 = sphi 0, %s165
      %s168 = sphi 0, %s167
      %s182 = sphi 0, %s168
      %s186 = sphi 0, %s186
      %s188 = sphi 0, %s186
      %s189 = sphi 0, %s188
      %s203 = sphi 0, %s189
      %s207 = sphi 0, %s207
      %s209 = sphi 0, %s207
      %s210 = sphi 0, %s209
      %s224 = sphi 0, %s210
      %s228 = sphi 0, %s228
      %s230 = sphi 0, %s228
      %s231 = sphi 0, %s230
      %s245 = sphi 0, %s231
      %s251 = sphi 0, %s253
      %s254 = sphi 0, %s251
      %s255 = sphi 0, %s254
      %s271 = sphi 0, %s255
    $region4: #{tpu_custom_call.1} parent=1 // loop_header_branch
      %29 = sbr.rel (%p27) target = $region8
    $region5: #{tpu_custom_call.1} parent=1 // loop_body
      %s31 = ssub.s32 %s26, 1
      %s32 = ssub.s32 %s26, 2
      %s33 = sadd.s32 %s26, 1
      %s34 = ssub.s32 %s26, %s33
      %p35 = scmp.eq.s32.totalorder %s34, 0
      %s37 = sadd.s32 %s36, 1
      %s38 = scalar_select %p35, %s36, %s37
      %p41 = pneg %p35
      %p42 = scmp.eq.s32.totalorder %s26, 1
      %p43 = por %p41, %p42
      %p44 = scmp.ne.s32.totalorder %s36, %s39
      %p45 = scmp.eq.s32.totalorder %s26, 0
      %p46 = por %p44, %p45
      %p47 = scmp.ne.s32.totalorder %s36, %s39
      %p48 = scmp.eq.s32.totalorder %s31, 1
      %p49 = por %p47, %p48
      %p50 = scmp.ne.s32.totalorder %s39, %s40
      %p51 = scmp.eq.s32.totalorder %s31, 0
      %p52 = por %p50, %p51
      %p53 = scmp.ne.s32.totalorder %s39, %s40
      %p54 = scmp.eq.s32.totalorder %s32, 1
      %p55 = por %p53, %p54
      %p57 = scmp.ne.s32.totalorder %s40, %s56
      %p58 = scmp.eq.s32.totalorder %s32, 0
      %p59 = por %p57, %p58
      %s61 = sadd.s32 %s60, 1
      %p64 = scmp.eq.s32.totalorder %s26, 1
      %p65 = scmp.ne.s32.totalorder %s60, %s62
      %p66 = scmp.eq.s32.totalorder %s26, 0
      %p67 = por %p65, %p66
      %p68 = scmp.ne.s32.totalorder %s60, %s62
      %p69 = scmp.eq.s32.totalorder %s31, 1
      %p70 = por %p68, %p69
      %p71 = scmp.ne.s32.totalorder %s62, %s63
      %p72 = scmp.eq.s32.totalorder %s31, 0
      %p73 = por %p71, %p72
      %p74 = scmp.ne.s32.totalorder %s62, %s63
      %p75 = scmp.eq.s32.totalorder %s32, 1
      %p76 = por %p74, %p75
      %p78 = scmp.ne.s32.totalorder %s63, %s77
      %p79 = scmp.eq.s32.totalorder %s32, 0
      %p80 = por %p78, %p79
      %s82 = sadd.s32 %s81, 1
      %p85 = scmp.eq.s32.totalorder %s26, 1
      %p86 = scmp.ne.s32.totalorder %s81, %s83
      %p87 = scmp.eq.s32.totalorder %s26, 0
      %p88 = por %p86, %p87
      %p89 = scmp.ne.s32.totalorder %s81, %s83
      %p90 = scmp.eq.s32.totalorder %s31, 1
      %p91 = por %p89, %p90
      %p92 = scmp.ne.s32.totalorder %s83, %s84
      %p93 = scmp.eq.s32.totalorder %s31, 0
      %p94 = por %p92, %p93
      %p95 = scmp.ne.s32.totalorder %s83, %s84
      %p96 = scmp.eq.s32.totalorder %s32, 1
      %p97 = por %p95, %p96
      %p99 = scmp.ne.s32.totalorder %s84, %s98
      %p100 = scmp.eq.s32.totalorder %s32, 0
      %p101 = por %p99, %p100
      %s103 = sadd.s32 %s102, 1
      %p106 = scmp.eq.s32.totalorder %s26, 1
      %p107 = scmp.ne.s32.totalorder %s102, %s104
      %p108 = scmp.eq.s32.totalorder %s26, 0
      %p109 = por %p107, %p108
      %p110 = scmp.ne.s32.totalorder %s102, %s104
      %p111 = scmp.eq.s32.totalorder %s31, 1
      %p112 = por %p110, %p111
      %p113 = scmp.ne.s32.totalorder %s104, %s105
      %p114 = scmp.eq.s32.totalorder %s31, 0
      %p115 = por %p113, %p114
      %p116 = scmp.ne.s32.totalorder %s104, %s105
      %p117 = scmp.eq.s32.totalorder %s32, 1
      %p118 = por %p116, %p117
      %p120 = scmp.ne.s32.totalorder %s105, %s119
      %p121 = scmp.eq.s32.totalorder %s32, 0
      %p122 = por %p120, %p121
      %s124 = sadd.s32 %s123, 1
      %p127 = scmp.eq.s32.totalorder %s26, 1
      %p128 = scmp.ne.s32.totalorder %s123, %s125
      %p129 = scmp.eq.s32.totalorder %s26, 0
      %p130 = por %p128, %p129
      %p131 = scmp.ne.s32.totalorder %s123, %s125
      %p132 = scmp.eq.s32.totalorder %s31, 1
      %p133 = por %p131, %p132
      %p134 = scmp.ne.s32.totalorder %s125, %s126
      %p135 = scmp.eq.s32.totalorder %s31, 0
      %p136 = por %p134, %p135
      %p137 = scmp.ne.s32.totalorder %s125, %s126
      %p138 = scmp.eq.s32.totalorder %s32, 1
      %p139 = por %p137, %p138
      %p141 = scmp.ne.s32.totalorder %s126, %s140
      %p142 = scmp.eq.s32.totalorder %s32, 0
      %p143 = por %p141, %p142
      %s145 = sadd.s32 %s144, 1
      %p148 = scmp.eq.s32.totalorder %s26, 1
      %p149 = scmp.ne.s32.totalorder %s144, %s146
      %p150 = scmp.eq.s32.totalorder %s26, 0
      %p151 = por %p149, %p150
      %p152 = scmp.ne.s32.totalorder %s144, %s146
      %p153 = scmp.eq.s32.totalorder %s31, 1
      %p154 = por %p152, %p153
      %p155 = scmp.ne.s32.totalorder %s146, %s147
      %p156 = scmp.eq.s32.totalorder %s31, 0
      %p157 = por %p155, %p156
      %p158 = scmp.ne.s32.totalorder %s146, %s147
      %p159 = scmp.eq.s32.totalorder %s32, 1
      %p160 = por %p158, %p159
      %p162 = scmp.ne.s32.totalorder %s147, %s161
      %p163 = scmp.eq.s32.totalorder %s32, 0
      %p164 = por %p162, %p163
      %s166 = sadd.s32 %s165, 1
      %p169 = scmp.eq.s32.totalorder %s26, 1
      %p170 = scmp.ne.s32.totalorder %s165, %s167
      %p171 = scmp.eq.s32.totalorder %s26, 0
      %p172 = por %p170, %p171
      %p173 = scmp.ne.s32.totalorder %s165, %s167
      %p174 = scmp.eq.s32.totalorder %s31, 1
      %p175 = por %p173, %p174
      %p176 = scmp.ne.s32.totalorder %s167, %s168
      %p177 = scmp.eq.s32.totalorder %s31, 0
      %p178 = por %p176, %p177
      %p179 = scmp.ne.s32.totalorder %s167, %s168
      %p180 = scmp.eq.s32.totalorder %s32, 1
      %p181 = por %p179, %p180
      %p183 = scmp.ne.s32.totalorder %s168, %s182
      %p184 = scmp.eq.s32.totalorder %s32, 0
      %p185 = por %p183, %p184
      %s187 = sadd.s32 %s186, 1
      %p190 = scmp.eq.s32.totalorder %s26, 1
      %p191 = scmp.ne.s32.totalorder %s186, %s188
      %p192 = scmp.eq.s32.totalorder %s26, 0
      %p193 = por %p191, %p192
      %p194 = scmp.ne.s32.totalorder %s186, %s188
      %p195 = scmp.eq.s32.totalorder %s31, 1
      %p196 = por %p194, %p195
      %p197 = scmp.ne.s32.totalorder %s188, %s189
      %p198 = scmp.eq.s32.totalorder %s31, 0
      %p199 = por %p197, %p198
      %p200 = scmp.ne.s32.totalorder %s188, %s189
      %p201 = scmp.eq.s32.totalorder %s32, 1
      %p202 = por %p200, %p201
      %p204 = scmp.ne.s32.totalorder %s189, %s203
      %p205 = scmp.eq.s32.totalorder %s32, 0
      %p206 = por %p204, %p205
      %s208 = sadd.s32 %s207, 1
      %p211 = scmp.eq.s32.totalorder %s26, 1
      %p212 = scmp.ne.s32.totalorder %s207, %s209
      %p213 = scmp.eq.s32.totalorder %s26, 0
      %p214 = por %p212, %p213
      %p215 = scmp.ne.s32.totalorder %s207, %s209
      %p216 = scmp.eq.s32.totalorder %s31, 1
      %p217 = por %p215, %p216
      %p218 = scmp.ne.s32.totalorder %s209, %s210
      %p219 = scmp.eq.s32.totalorder %s31, 0
      %p220 = por %p218, %p219
      %p221 = scmp.ne.s32.totalorder %s209, %s210
      %p222 = scmp.eq.s32.totalorder %s32, 1
      %p223 = por %p221, %p222
      %p225 = scmp.ne.s32.totalorder %s210, %s224
      %p226 = scmp.eq.s32.totalorder %s32, 0
      %p227 = por %p225, %p226
      %s229 = sadd.s32 %s228, 1
      %p232 = scmp.eq.s32.totalorder %s26, 1
      %p233 = scmp.ne.s32.totalorder %s228, %s230
      %p234 = scmp.eq.s32.totalorder %s26, 0
      %p235 = por %p233, %p234
      %p236 = scmp.ne.s32.totalorder %s228, %s230
      %p237 = scmp.eq.s32.totalorder %s31, 1
      %p238 = por %p236, %p237
      %p239 = scmp.ne.s32.totalorder %s230, %s231
      %p240 = scmp.eq.s32.totalorder %s31, 0
      %p241 = por %p239, %p240
      %p242 = scmp.ne.s32.totalorder %s230, %s231
      %p243 = scmp.eq.s32.totalorder %s32, 1
      %p244 = por %p242, %p243
      %p246 = scmp.ne.s32.totalorder %s231, %s245
      %p247 = scmp.eq.s32.totalorder %s32, 0
      %p248 = por %p246, %p247
      %s249 = ssub.s32 %s26, %s33
      %p250 = scmp.eq.s32.totalorder %s249, 0
      %s252 = sadd.s32 %s251, 1
      %s253 = scalar_select %p250, %s251, %s252
      %p256 = pneg %p250
      %p257 = scmp.eq.s32.totalorder %s26, 1
      %p258 = por %p256, %p257
      %p259 = scmp.ne.s32.totalorder %s251, %s254
      %p260 = scmp.eq.s32.totalorder %s26, 0
      %p261 = por %p259, %p260
      %p262 = scmp.ne.s32.totalorder %s251, %s254
      %p263 = scmp.eq.s32.totalorder %s31, 1
      %p264 = por %p262, %p263
      %p265 = scmp.ne.s32.totalorder %s254, %s255
      %p266 = scmp.eq.s32.totalorder %s31, 0
      %p267 = por %p265, %p266
      %p268 = scmp.ne.s32.totalorder %s254, %s255
      %p269 = scmp.eq.s32.totalorder %s32, 1
      %p270 = por %p268, %p269
      %p272 = scmp.ne.s32.totalorder %s255, %s271
      %p273 = scmp.eq.s32.totalorder %s32, 0
      %p274 = por %p272, %p273
      %p275 = scmp.le.s32.totalorder 1, %s26
      %p276 = scmp.lt.s32.totalorder %s26, 3
      %p277 = pnand %p275, %p276
      %p278 = pneg %p277
      // Predicated region
      $region9: #{tpu_custom_call.1} parent=5 // pred_check
        _
      $region10: #{tpu_custom_call.1} parent=5 // pred_check_branch
        %280 = sbr.rel (%p277) target = $region12
      $region11: #{tpu_custom_call.1} parent=5 // pred_region
        %s281 = ssub.s32 %s26, 1
        // Predicated region
        $region13: #{tpu_custom_call.1} parent=11 // pred_check
          %p282 = pneg %p73
        $region14: #{tpu_custom_call.1} parent=11 // pred_check_branch
          %284 = sbr.rel (%p282) target = $region16
        $region15: #{tpu_custom_call.1} parent=11 // pred_region
          %s286 = ssub.s32 12288, 12288
          %287 = vsyncadd [#allocation6], %s286
          %s288 = sshll.u32 [#allocation5], 4
          %s289 = int_to_ptr.vmem [resolvable:$true] %s288
          %294 = dma.hbm_to_vmem [thread:$0]  %s1, 12288, %s289, [#allocation6], 128, 128, 8
        $region16: #{tpu_custom_call.1} parent=11 // pred_fallthru
          _
        // Predicated region
        $region17: #{tpu_custom_call.1} parent=11 // pred_check
          %p295 = pneg %p94
        $region18: #{tpu_custom_call.1} parent=11 // pred_check_branch
          %297 = sbr.rel (%p295) target = $region20
        $region19: #{tpu_custom_call.1} parent=11 // pred_region
          %s299 = ssub.s32 3072, 3072
          %300 = vsyncadd [#allocation6], %s299
          %s301 = sshll.u32 [#allocation7], 4
          %s302 = int_to_ptr.vmem [resolvable:$true] %s301
          %307 = dma.hbm_to_vmem [thread:$0]  %s2, 3072, %s302, [#allocation6], 128, 128, 8
        $region20: #{tpu_custom_call.1} parent=11 // pred_fallthru
          _
        // Predicated region
        $region21: #{tpu_custom_call.1} parent=11 // pred_check
          %p308 = pneg %p115
        $region22: #{tpu_custom_call.1} parent=11 // pred_check_branch
          %310 = sbr.rel (%p308) target = $region24
        $region23: #{tpu_custom_call.1} parent=11 // pred_region
          %s312 = ssub.s32 3072, 3072
          %313 = vsyncadd [#allocation9], %s312
          %s314 = sshll.u32 [#allocation8], 4
          %s315 = int_to_ptr.vmem [resolvable:$true] %s314
          %320 = dma.hbm_to_vmem [thread:$0]  %s3, 3072, %s315, [#allocation9], 128, 128, 8
        $region24: #{tpu_custom_call.1} parent=11 // pred_fallthru
          _
        // Predicated region
        $region25: #{tpu_custom_call.1} parent=11 // pred_check
          %p321 = pneg %p136
        $region26: #{tpu_custom_call.1} parent=11 // pred_check_branch
          %323 = sbr.rel (%p321) target = $region28
        $region27: #{tpu_custom_call.1} parent=11 // pred_region
          %s325 = ssub.s32 2048, 2048
          %326 = vsyncadd [#allocation9], %s325
          %s327 = sshll.u32 [#allocation10], 4
          %s328 = int_to_ptr.vmem [resolvable:$true] %s327
          %333 = dma.hbm_to_vmem [thread:$0]  %s4, 2048, %s328, [#allocation9], 128, 128, 8
        $region28: #{tpu_custom_call.1} parent=11 // pred_fallthru
          _
        // Predicated region
        $region29: #{tpu_custom_call.1} parent=11 // pred_check
          %p334 = pneg %p157
        $region30: #{tpu_custom_call.1} parent=11 // pred_check_branch
          %336 = sbr.rel (%p334) target = $region32
        $region31: #{tpu_custom_call.1} parent=11 // pred_region
          %s338 = ssub.s32 512, 512
          %339 = vsyncadd [#allocation12], %s338
          %s340 = sshll.u32 [#allocation11], 4
          %s341 = int_to_ptr.vmem [resolvable:$true] %s340
          %346 = dma.hbm_to_vmem [thread:$0]  %s5, 512, %s341, [#allocation12], 128, 128, 8
        $region32: #{tpu_custom_call.1} parent=11 // pred_fallthru
          _
        // Predicated region
        $region33: #{tpu_custom_call.1} parent=11 // pred_check
          %p347 = pneg %p178
        $region34: #{tpu_custom_call.1} parent=11 // pred_check_branch
          %349 = sbr.rel (%p347) target = $region36
        $region35: #{tpu_custom_call.1} parent=11 // pred_region
          %s351 = ssub.s32 512, 512
          %352 = vsyncadd [#allocation12], %s351
          %s353 = sshll.u32 [#allocation13], 4
          %s354 = int_to_ptr.vmem [resolvable:$true] %s353
          %359 = dma.hbm_to_vmem [thread:$0]  %s6, 512, %s354, [#allocation12], 128, 128, 8
        $region36: #{tpu_custom_call.1} parent=11 // pred_fallthru
          _
        // Predicated region
        $region37: #{tpu_custom_call.1} parent=11 // pred_check
          %p360 = pneg %p199
        $region38: #{tpu_custom_call.1} parent=11 // pred_check_branch
          %362 = sbr.rel (%p360) target = $region40
        $region39: #{tpu_custom_call.1} parent=11 // pred_region
          _
        $region40: #{tpu_custom_call.1} parent=11 // pred_fallthru
          _
        // Predicated region
        $region41: #{tpu_custom_call.1} parent=11 // pred_check
          %p363 = pneg %p220
        $region42: #{tpu_custom_call.1} parent=11 // pred_check_branch
          %365 = sbr.rel (%p363) target = $region44
        $region43: #{tpu_custom_call.1} parent=11 // pred_region
          %s367 = ssub.s32 2048, 2048
          %368 = vsyncadd [#allocation15], %s367
          %s369 = sshll.u32 [#allocation14], 4
          %s370 = int_to_ptr.vmem [resolvable:$true] %s369
          %375 = dma.hbm_to_vmem [thread:$0]  %s8, 2048, %s370, [#allocation15], 128, 128, 8
        $region44: #{tpu_custom_call.1} parent=11 // pred_fallthru
          _
        // Predicated region
        $region45: #{tpu_custom_call.1} parent=11 // pred_check
          %p376 = pneg %p241
        $region46: #{tpu_custom_call.1} parent=11 // pred_check_branch
          %378 = sbr.rel (%p376) target = $region48
        $region47: #{tpu_custom_call.1} parent=11 // pred_region
          _
        $region48: #{tpu_custom_call.1} parent=11 // pred_fallthru
          _
      $region12: #{tpu_custom_call.1} parent=5 // pred_fallthru
        _
      %p379 = scmp.lt.s32.totalorder %s26, 2
      // Predicated region
      $region49: #{tpu_custom_call.1} parent=5 // pred_check
        %p380 = pneg %p379
      $region50: #{tpu_custom_call.1} parent=5 // pred_check_branch
        %382 = sbr.rel (%p380) target = $region52
      $region51: #{tpu_custom_call.1} parent=5 // pred_region
        // Predicated region
        $region53: #{tpu_custom_call.1} parent=51 // pred_check
          %p383 = pneg %p46
        $region54: #{tpu_custom_call.1} parent=51 // pred_check_branch
          %385 = sbr.rel (%p383) target = $region56
        $region55: #{tpu_custom_call.1} parent=51 // pred_region
          %s386 = sand.u32 %s36, 1
          %s387 = scalar_lea.sflag [#allocation3], %s386
          %s388 = sand.u32 %s36, 1
          %s389 = smul.addr %s388, 32
          %s390 = scalar_lea.vmem [#allocation2], %s389
          %s391 = smul.u32 4, %s26
          %s393 = ssub.s32 512, 512
          %394 = vsyncadd %s387, %s393
          %s395 = smul.addr %s391, 128
          %s396 = scalar_lea.hbm %s0, %s395
          %s397 = sshll.u32 %s390, 4
          %s398 = int_to_ptr.vmem [resolvable:$true] %s397
          %403 = dma.hbm_to_vmem [thread:$0]  %s396, 512, %s398, %s387, 128, 128, 8
        $region56: #{tpu_custom_call.1} parent=51 // pred_fallthru
          _
      $region52: #{tpu_custom_call.1} parent=5 // pred_fallthru
        _
      %p404 = scmp.le.s32.totalorder 1, %s26
      %p405 = scmp.lt.s32.totalorder %s26, 3
      %p406 = pnand %p404, %p405
      %p407 = pneg %p406
      // Predicated region
      $region57: #{tpu_custom_call.1} parent=5 // pred_check
        _
      $region58: #{tpu_custom_call.1} parent=5 // pred_check_branch
        %409 = sbr.rel (%p406) target = $region60
      $region59: #{tpu_custom_call.1} parent=5 // pred_region
        %s410 = ssub.s32 %s26, 1
        %s411 = sand.u32 %s39, 1
        %s412 = scalar_lea.sflag [#allocation3], %s411
        %s413 = sand.u32 %s39, 1
        %s414 = smul.addr %s413, 32
        %s415 = scalar_lea.vmem [#allocation2], %s414
        // Predicated region
        $region61: #{tpu_custom_call.1} parent=59 // pred_check
          %p416 = pneg %p52
        $region62: #{tpu_custom_call.1} parent=59 // pred_check_branch
          %418 = sbr.rel (%p416) target = $region64
        $region63: #{tpu_custom_call.1} parent=59 // pred_region
          %419 = dma.done %s412, 512
        $region64: #{tpu_custom_call.1} parent=59 // pred_fallthru
          _
        // Predicated region
        $region65: #{tpu_custom_call.1} parent=59 // pred_check
          %p420 = pneg %p73
        $region66: #{tpu_custom_call.1} parent=59 // pred_check_branch
          %422 = sbr.rel (%p420) target = $region68
        $region67: #{tpu_custom_call.1} parent=59 // pred_region
          %423 = dma.done [#allocation6], 12288
        $region68: #{tpu_custom_call.1} parent=59 // pred_fallthru
          _
        // Predicated region
        $region69: #{tpu_custom_call.1} parent=59 // pred_check
          %p424 = pneg %p94
        $region70: #{tpu_custom_call.1} parent=59 // pred_check_branch
          %426 = sbr.rel (%p424) target = $region72
        $region71: #{tpu_custom_call.1} parent=59 // pred_region
          %427 = dma.done [#allocation6], 3072
        $region72: #{tpu_custom_call.1} parent=59 // pred_fallthru
          _
        // Predicated region
        $region73: #{tpu_custom_call.1} parent=59 // pred_check
          %p428 = pneg %p115
        $region74: #{tpu_custom_call.1} parent=59 // pred_check_branch
          %430 = sbr.rel (%p428) target = $region76
        $region75: #{tpu_custom_call.1} parent=59 // pred_region
          %431 = dma.done [#allocation9], 3072
        $region76: #{tpu_custom_call.1} parent=59 // pred_fallthru
          _
        // Predicated region
        $region77: #{tpu_custom_call.1} parent=59 // pred_check
          %p432 = pneg %p136
        $region78: #{tpu_custom_call.1} parent=59 // pred_check_branch
          %434 = sbr.rel (%p432) target = $region80
        $region79: #{tpu_custom_call.1} parent=59 // pred_region
          %435 = dma.done [#allocation9], 2048
        $region80: #{tpu_custom_call.1} parent=59 // pred_fallthru
          _
        // Predicated region
        $region81: #{tpu_custom_call.1} parent=59 // pred_check
          %p436 = pneg %p157
        $region82: #{tpu_custom_call.1} parent=59 // pred_check_branch
          %438 = sbr.rel (%p436) target = $region84
        $region83: #{tpu_custom_call.1} parent=59 // pred_region
          %439 = dma.done [#allocation12], 512
        $region84: #{tpu_custom_call.1} parent=59 // pred_fallthru
          _
        // Predicated region
        $region85: #{tpu_custom_call.1} parent=59 // pred_check
          %p440 = pneg %p178
        $region86: #{tpu_custom_call.1} parent=59 // pred_check_branch
          %442 = sbr.rel (%p440) target = $region88
        $region87: #{tpu_custom_call.1} parent=59 // pred_region
          %443 = dma.done [#allocation12], 512
        $region88: #{tpu_custom_call.1} parent=59 // pred_fallthru
          _
        // Predicated region
        $region89: #{tpu_custom_call.1} parent=59 // pred_check
          %p444 = pneg %p220
        $region90: #{tpu_custom_call.1} parent=59 // pred_check_branch
          %446 = sbr.rel (%p444) target = $region92
        $region91: #{tpu_custom_call.1} parent=59 // pred_region
          %447 = dma.done [#allocation15], 2048
        $region92: #{tpu_custom_call.1} parent=59 // pred_fallthru
          _
        %s448 = sand.u32 %s39, 1
        %s449 = scalar_lea.sflag [#allocation3], %s448
        %s450 = sand.u32 %s39, 1
        %s451 = smul.addr %s450, 32
        %s452 = scalar_lea.vmem [#allocation2], %s451
        %p453 = pneg %p52
        %p454 = pneg %p49
        %p455 = pneg %p73
        %p456 = pneg %p70
        %p457 = pneg %p94
        %p458 = pneg %p91
        %p459 = pneg %p115
        %p460 = pneg %p112
        %p461 = pneg %p136
        %p462 = pneg %p133
        %p463 = pneg %p157
        %p464 = pneg %p154
        %p465 = pneg %p178
        %p466 = pneg %p175
        %p467 = pneg %p199
        %p468 = pneg %p196
        %p469 = pneg %p220
        %p470 = pneg %p217
        %p471 = pneg %p241
        %p472 = pneg %p238
        %p473 = pneg %p267
        %p474 = pneg %p264
        %s475 = sand.u32 %s254, 1
        %s476 = scalar_lea.sflag [#allocation4], %s475
        %s477 = sand.u32 %s254, 1
        %s478 = smul.addr %s477, 4
        %s479 = scalar_lea.vmem [#allocation16], %s478
        %s480 = smul.u32 4, %s31
        %v481 = vld [vmem:[%s415] sm:$0xff]
        %v482 = vld [vmem:[%s415 + $0x8] sm:$0xff]
        %v483 = vld [vmem:[%s415 + $0x10] sm:$0xff]
        %v484 = vld [vmem:[%s415 + $0x18] sm:$0xff]
        %v485 = vld [vmem:[#allocation5] sm:$0xff]
        %v486 = vld [vmem:[#allocation5 + $0x8] sm:$0xff]
        %v487 = vld [vmem:[#allocation5 + $0x10] sm:$0xff]
        %v488 = vld [vmem:[#allocation5 + $0x18] sm:$0xff]
        %v489 = vld [vmem:[#allocation5 + $0x20] sm:$0xff]
        %v490 = vld [vmem:[#allocation5 + $0x28] sm:$0xff]
        %v491 = vld [vmem:[#allocation5 + $0x30] sm:$0xff]
        %v492 = vld [vmem:[#allocation5 + $0x38] sm:$0xff]
        %v493 = vld [vmem:[#allocation5 + $0x40] sm:$0xff]
        %v494 = vld [vmem:[#allocation5 + $0x48] sm:$0xff]
        %v495 = vld [vmem:[#allocation5 + $0x50] sm:$0xff]
        %v496 = vld [vmem:[#allocation5 + $0x58] sm:$0xff]
        %v497 = vld [vmem:[#allocation5 + $0x60] sm:$0xff]
        %v498 = vld [vmem:[#allocation5 + $0x68] sm:$0xff]
        %v499 = vld [vmem:[#allocation5 + $0x70] sm:$0xff]
        %v500 = vld [vmem:[#allocation5 + $0x78] sm:$0xff]
        %501 = vmatprep.subr.mxu0 0.0
        %502 = vmatpush1.msra.mxu0 %v485
        %503 = vmatprep.subr.mxu0 0.0
        %504 = vmatpush1.msra.mxu0 %v486
        %505 = vmatprep.subr.mxu0 0.0
        %506 = vmatpush1.msra.mxu0 %v487
        %507 = vmatprep.subr.mxu0 0.0
        %508 = vmatpush1.msra.mxu0 %v488
        %509 = vmatprep.subr.mxu0 0.0
        %510 = vmatpush1.msra.mxu0 %v489
        %511 = vmatprep.subr.mxu0 0.0
        %512 = vmatpush1.msra.mxu0 %v490
        %513 = vmatprep.subr.mxu0 0.0
        %514 = vmatpush1.msra.mxu0 %v491
        %515 = vmatprep.subr.mxu0 0.0
        %516 = vmatpush1.msra.mxu0 %v492
        %517 = vmatprep.subr.mxu0 0.0
        %518 = vmatpush1.msra.mxu0 %v493
        %519 = vmatprep.subr.mxu0 0.0
        %520 = vmatpush1.msra.mxu0 %v494
        %521 = vmatprep.subr.mxu0 0.0
        %522 = vmatpush1.msra.mxu0 %v495
        %523 = vmatprep.subr.mxu0 0.0
        %524 = vmatpush1.msra.mxu0 %v496
        %525 = vmatprep.subr.mxu0 0.0
        %526 = vmatpush1.msra.mxu0 %v497
        %527 = vmatprep.subr.mxu0 0.0
        %528 = vmatpush1.msra.mxu0 %v498
        %529 = vmatprep.subr.mxu0 0.0
        %530 = vmatpush1.msra.mxu0 %v499
        %531 = vmatprep.subr.mxu0 0.0
        %532 = vmatpush1.msra.mxu0 %v500
        %533 = vmatprep.subr.mxu0 0.0
        %534 = vmatpush1.msra.mxu0 0.0
        %535 = vmatprep.subr.mxu0 0.0
        %536 = vmatpush1.msra.mxu0 0.0
        %537 = vmatprep.subr.mxu0 0.0
        %538 = vmatpush1.msra.mxu0 0.0
        %539 = vmatprep.subr.mxu0 0.0
        %540 = vmatpush1.msra.mxu0 0.0
        %541 = vmatprep.subr.mxu0 0.0
        %542 = vmatpush1.msra.mxu0 0.0
        %543 = vmatprep.subr.mxu0 0.0
        %544 = vmatpush1.msra.mxu0 0.0
        %545 = vmatprep.subr.mxu0 0.0
        %546 = vmatpush1.msra.mxu0 0.0
        %547 = vmatprep.subr.mxu0 0.0
        %548 = vmatpush1.msra.mxu0 0.0
        %549 = vmatprep.subr.mxu0 0.0
        %550 = vmatpush1.msra.mxu0 0.0
        %551 = vmatprep.subr.mxu0 0.0
        %552 = vmatpush1.msra.mxu0 0.0
        %553 = vmatprep.subr.mxu0 0.0
        %554 = vmatpush1.msra.mxu0 0.0
        %555 = vmatprep.subr.mxu0 0.0
        %556 = vmatpush1.msra.mxu0 0.0
        %557 = vmatprep.subr.mxu0 0.0
        %558 = vmatpush1.msra.mxu0 0.0
        %559 = vmatprep.subr.mxu0 0.0
        %560 = vmatpush1.msra.mxu0 0.0
        %561 = vmatprep.subr.mxu0 0.0
        %562 = vmatpush1.msra.mxu0 0.0
        %563 = vmatprep.subr.mxu0 0.0
        %564 = vmatpush1.msra.mxu0 0.0
        %565 = vmatprep.mubr.f32.mxu0 0.0
        %566 = vmatmul.mubr.f32.gmra.mrb[0].mxu0 %v481
        %v567 = vpop.f32.mrb[0].mxu0
        %v568 = vadd.f32 0.0, %v567
        %v569 = vpop.f32.mrb[0].mxu0
        %570 = vmatprep.mubr.f32.mxu0 0.0
        %571 = vmatmul.mubr.f32.gmra.mrb[0].mxu0 %v482
        %v572 = vpop.f32.mrb[0].mxu0
        %v573 = vadd.f32 0.0, %v572
        %v574 = vpop.f32.mrb[0].mxu0
        %575 = vmatprep.mubr.f32.mxu0 0.0
        %576 = vmatmul.mubr.f32.gmra.mrb[0].mxu0 %v483
        %v577 = vpop.f32.mrb[0].mxu0
        %v578 = vadd.f32 0.0, %v577
        %v579 = vpop.f32.mrb[0].mxu0
        %580 = vmatprep.mubr.f32.mxu0 0.0
        %581 = vmatmul.mubr.f32.gmra.mrb[0].mxu0 %v484
        %v582 = vpop.f32.mrb[0].mxu0
        %v583 = vadd.f32 0.0, %v582
        %v584 = vpop.f32.mrb[0].mxu0
        %585 = vdwg.mxu0
        %v586 = vld [vmem:[#allocation7] sm:$0xff]
        %v587 = vld [vmem:[#allocation7 + $0x8] sm:$0xff]
        %v588 = vld [vmem:[#allocation7 + $0x10] sm:$0xff]
        %v589 = vld [vmem:[#allocation7 + $0x18] sm:$0xff]
        %v590 = vld [vmem:[#allocation8] sm:$0xff]
        %v591 = vld [vmem:[#allocation8 + $0x8] sm:$0xff]
        %v592 = vld [vmem:[#allocation8 + $0x10] sm:$0xff]
        %v593 = vld [vmem:[#allocation8 + $0x18] sm:$0xff]
        %vm594 = vcmask 261120
        %v596 = vsel %vm594, %v586, 0
        %v599 = vsel %vm594, %v587, 0
        %v602 = vsel %vm594, %v588, 0
        %v605 = vsel %vm594, %v589, 0
        %607 = vmatprep.subr.mxu0 0.0
        %608 = vmatpush1.msra.mxu0 %v568
        %609 = vmatprep.subr.mxu0 0.0
        %610 = vmatpush1.msra.mxu0 %v573
        %611 = vmatprep.subr.mxu0 0.0
        %612 = vmatpush1.msra.mxu0 %v578
        %613 = vmatprep.subr.mxu0 0.0
        %614 = vmatpush1.msra.mxu0 %v583
        %615 = vmatprep.subr.mxu0 0.0
        %616 = vmatpush1.msra.mxu0 0.0
        %617 = vmatprep.subr.mxu0 0.0
        %618 = vmatpush1.msra.mxu0 0.0
        %619 = vmatprep.subr.mxu0 0.0
        %620 = vmatpush1.msra.mxu0 0.0
        %621 = vmatprep.subr.mxu0 0.0
        %622 = vmatpush1.msra.mxu0 0.0
        %623 = vmatprep.subr.mxu0 0.0
        %624 = vmatpush1.msra.mxu0 0.0
        %625 = vmatprep.subr.mxu0 0.0
        %626 = vmatpush1.msra.mxu0 0.0
        %627 = vmatprep.subr.mxu0 0.0
        %628 = vmatpush1.msra.mxu0 0.0
        %629 = vmatprep.subr.mxu0 0.0
        %630 = vmatpush1.msra.mxu0 0.0
        %631 = vmatprep.subr.mxu0 0.0
        %632 = vmatpush1.msra.mxu0 0.0
        %633 = vmatprep.subr.mxu0 0.0
        %634 = vmatpush1.msra.mxu0 0.0
        %635 = vmatprep.subr.mxu0 0.0
        %636 = vmatpush1.msra.mxu0 0.0
        %637 = vmatprep.subr.mxu0 0.0
        %638 = vmatpush1.msra.mxu0 0.0
        %639 = vmatprep.subr.mxu0 0.0
        %640 = vmatpush1.msra.mxu0 0.0
        %641 = vmatprep.subr.mxu0 0.0
        %642 = vmatpush1.msra.mxu0 0.0
        %643 = vmatprep.subr.mxu0 0.0
        %644 = vmatpush1.msra.mxu0 0.0
        %645 = vmatprep.subr.mxu0 0.0
        %646 = vmatpush1.msra.mxu0 0.0
        %647 = vmatprep.subr.mxu0 0.0
        %648 = vmatpush1.msra.mxu0 0.0
        %649 = vmatprep.subr.mxu0 0.0
        %650 = vmatpush1.msra.mxu0 0.0
        %651 = vmatprep.subr.mxu0 0.0
        %652 = vmatpush1.msra.mxu0 0.0
        %653 = vmatprep.subr.mxu0 0.0
        %654 = vmatpush1.msra.mxu0 0.0
        %655 = vmatprep.subr.mxu0 0.0
        %656 = vmatpush1.msra.mxu0 0.0
        %657 = vmatprep.subr.mxu0 0.0
        %658 = vmatpush1.msra.mxu0 0.0
        %659 = vmatprep.subr.mxu0 0.0
        %660 = vmatpush1.msra.mxu0 0.0
        %661 = vmatprep.subr.mxu0 0.0
        %662 = vmatpush1.msra.mxu0 0.0
        %663 = vmatprep.subr.mxu0 0.0
        %664 = vmatpush1.msra.mxu0 0.0
        %665 = vmatprep.subr.mxu0 0.0
        %666 = vmatpush1.msra.mxu0 0.0
        %667 = vmatprep.subr.mxu0 0.0
        %668 = vmatpush1.msra.mxu0 0.0
        %669 = vmatprep.subr.mxu0 0.0
        %670 = vmatpush1.msra.mxu0 0.0
        %671 = vmatprep.mubr.f32.mxu0 0.0
        %672 = vmatmul.mubr.f32.gmra.mrb[0].mxu0 %v596
        %v673 = vpop.f32.mrb[0].mxu0
        %v674 = vadd.f32 %v590, %v673
        %v675 = vpop.f32.mrb[0].mxu0
        %676 = vmatprep.mubr.f32.mxu0 0.0
        %677 = vmatmul.mubr.f32.gmra.mrb[0].mxu0 %v599
        %v678 = vpop.f32.mrb[0].mxu0
        %v679 = vadd.f32 %v591, %v678
        %v680 = vpop.f32.mrb[0].mxu0
        %681 = vmatprep.mubr.f32.mxu0 0.0
        %682 = vmatmul.mubr.f32.gmra.mrb[0].mxu0 %v602
        %v683 = vpop.f32.mrb[0].mxu0
        %v684 = vadd.f32 %v592, %v683
        %v685 = vpop.f32.mrb[0].mxu0
        %686 = vmatprep.mubr.f32.mxu0 0.0
        %687 = vmatmul.mubr.f32.gmra.mrb[0].mxu0 %v605
        %v688 = vpop.f32.mrb[0].mxu0
        %v689 = vadd.f32 %v593, %v688
        %v690 = vpop.f32.mrb[0].mxu0
        %691 = vdwg.mxu0
        %vm692 = vcmp.ge.f32.partialorder %v674, 0.0
        %vm693 = vcmp.ge.f32.partialorder %v679, 0.0
        %vm694 = vcmp.ge.f32.partialorder %v684, 0.0
        %vm695 = vcmp.ge.f32.partialorder %v689, 0.0
        %v696 = vsel %vm692, 1, 0
        %v697 = vsel %vm693, 1, 0
        %v698 = vsel %vm694, 1, 0
        %v699 = vsel %vm695, 1, 0
        %v700 = vcvt.s32.f32 %v696
        %v701 = vcvt.s32.f32 %v697
        %v702 = vcvt.s32.f32 %v698
        %v703 = vcvt.s32.f32 %v699
        %s704 = scalar_lea.vmem [#allocation5], 128
        %v705 = vld [vmem:[%s704] sm:$0xff]
        %v706 = vld [vmem:[%s704 + $0x8] sm:$0xff]
        %v707 = vld [vmem:[%s704 + $0x10] sm:$0xff]
        %v708 = vld [vmem:[%s704 + $0x18] sm:$0xff]
        %v709 = vld [vmem:[%s704 + $0x20] sm:$0xff]
        %v710 = vld [vmem:[%s704 + $0x28] sm:$0xff]
        %v711 = vld [vmem:[%s704 + $0x30] sm:$0xff]
        %v712 = vld [vmem:[%s704 + $0x38] sm:$0xff]
        %v713 = vld [vmem:[%s704 + $0x40] sm:$0xff]
        %v714 = vld [vmem:[%s704 + $0x48] sm:$0xff]
        %v715 = vld [vmem:[%s704 + $0x50] sm:$0xff]
        %v716 = vld [vmem:[%s704 + $0x58] sm:$0xff]
        %v717 = vld [vmem:[%s704 + $0x60] sm:$0xff]
        %v718 = vld [vmem:[%s704 + $0x68] sm:$0xff]
        %v719 = vld [vmem:[%s704 + $0x70] sm:$0xff]
        %v720 = vld [vmem:[%s704 + $0x78] sm:$0xff]
        %721 = vmatprep.subr.mxu0 0.0
        %722 = vmatpush1.msra.mxu0 %v705
        %723 = vmatprep.subr.mxu0 0.0
        %724 = vmatpush1.msra.mxu0 %v706
        %725 = vmatprep.subr.mxu0 0.0
        %726 = vmatpush1.msra.mxu0 %v707
        %727 = vmatprep.subr.mxu0 0.0
        %728 = vmatpush1.msra.mxu0 %v708
        %729 = vmatprep.subr.mxu0 0.0
        %730 = vmatpush1.msra.mxu0 %v709
        %731 = vmatprep.subr.mxu0 0.0
        %732 = vmatpush1.msra.mxu0 %v710
        %733 = vmatprep.subr.mxu0 0.0
        %734 = vmatpush1.msra.mxu0 %v711
        %735 = vmatprep.subr.mxu0 0.0
        %736 = vmatpush1.msra.mxu0 %v712
        %737 = vmatprep.subr.mxu0 0.0
        %738 = vmatpush1.msra.mxu0 %v713
        %739 = vmatprep.subr.mxu0 0.0
        %740 = vmatpush1.msra.mxu0 %v714
        %741 = vmatprep.subr.mxu0 0.0
        %742 = vmatpush1.msra.mxu0 %v715
        %743 = vmatprep.subr.mxu0 0.0
        %744 = vmatpush1.msra.mxu0 %v716
        %745 = vmatprep.subr.mxu0 0.0
        %746 = vmatpush1.msra.mxu0 %v717
        %747 = vmatprep.subr.mxu0 0.0
        %748 = vmatpush1.msra.mxu0 %v718
        %749 = vmatprep.subr.mxu0 0.0
        %750 = vmatpush1.msra.mxu0 %v719
        %751 = vmatprep.subr.mxu0 0.0
        %752 = vmatpush1.msra.mxu0 %v720
        %753 = vmatprep.subr.mxu0 0.0
        %754 = vmatpush1.msra.mxu0 0.0
        %755 = vmatprep.subr.mxu0 0.0
        %756 = vmatpush1.msra.mxu0 0.0
        %757 = vmatprep.subr.mxu0 0.0
        %758 = vmatpush1.msra.mxu0 0.0
        %759 = vmatprep.subr.mxu0 0.0
        %760 = vmatpush1.msra.mxu0 0.0
        %761 = vmatprep.subr.mxu0 0.0
        %762 = vmatpush1.msra.mxu0 0.0
        %763 = vmatprep.subr.mxu0 0.0
        %764 = vmatpush1.msra.mxu0 0.0
        %765 = vmatprep.subr.mxu0 0.0
        %766 = vmatpush1.msra.mxu0 0.0
        %767 = vmatprep.subr.mxu0 0.0
        %768 = vmatpush1.msra.mxu0 0.0
        %769 = vmatprep.subr.mxu0 0.0
        %770 = vmatpush1.msra.mxu0 0.0
        %771 = vmatprep.subr.mxu0 0.0
        %772 = vmatpush1.msra.mxu0 0.0
        %773 = vmatprep.subr.mxu0 0.0
        %774 = vmatpush1.msra.mxu0 0.0
        %775 = vmatprep.subr.mxu0 0.0
        %776 = vmatpush1.msra.mxu0 0.0
        %777 = vmatprep.subr.mxu0 0.0
        %778 = vmatpush1.msra.mxu0 0.0
        %779 = vmatprep.subr.mxu0 0.0
        %780 = vmatpush1.msra.mxu0 0.0
        %781 = vmatprep.subr.mxu0 0.0
        %782 = vmatpush1.msra.mxu0 0.0
        %783 = vmatprep.subr.mxu0 0.0
        %784 = vmatpush1.msra.mxu0 0.0
        %785 = vmatprep.mubr.f32.mxu0 0.0
        %786 = vmatmul.mubr.f32.gmra.mrb[0].mxu0 %v700
        %v787 = vpop.f32.mrb[0].mxu0
        %v788 = vadd.f32 0.0, %v787
        %v789 = vpop.f32.mrb[0].mxu0
        %790 = vmatprep.mubr.f32.mxu0 0.0
        %791 = vmatmul.mubr.f32.gmra.mrb[0].mxu0 %v701
        %v792 = vpop.f32.mrb[0].mxu0
        %v793 = vadd.f32 0.0, %v792
        %v794 = vpop.f32.mrb[0].mxu0
        %795 = vmatprep.mubr.f32.mxu0 0.0
        %796 = vmatmul.mubr.f32.gmra.mrb[0].mxu0 %v702
        %v797 = vpop.f32.mrb[0].mxu0
        %v798 = vadd.f32 0.0, %v797
        %v799 = vpop.f32.mrb[0].mxu0
        %800 = vmatprep.mubr.f32.mxu0 0.0
        %801 = vmatmul.mubr.f32.gmra.mrb[0].mxu0 %v703
        %v802 = vpop.f32.mrb[0].mxu0
        %v803 = vadd.f32 0.0, %v802
        %v804 = vpop.f32.mrb[0].mxu0
        %805 = vdwg.mxu0
        %s806 = scalar_lea.vmem [#allocation7], 32
        %v807 = vld [vmem:[%s806] sm:$0xff]
        %v808 = vld [vmem:[%s806 + $0x8] sm:$0xff]
        %v809 = vld [vmem:[%s806 + $0x10] sm:$0xff]
        %v810 = vld [vmem:[%s806 + $0x18] sm:$0xff]
        %s811 = scalar_lea.vmem [#allocation8], 32
        %v812 = vld [vmem:[%s811] sm:$0xff]
        %v813 = vld [vmem:[%s811 + $0x8] sm:$0xff]
        %v814 = vld [vmem:[%s811 + $0x10] sm:$0xff]
        %v815 = vld [vmem:[%s811 + $0x18] sm:$0xff]
        %v817 = vsel %vm594, %v807, 0
        %v820 = vsel %vm594, %v808, 0
        %v823 = vsel %vm594, %v809, 0
        %v826 = vsel %vm594, %v810, 0
        %828 = vmatprep.subr.mxu0 0.0
        %829 = vmatpush1.msra.mxu0 %v788
        %830 = vmatprep.subr.mxu0 0.0
        %831 = vmatpush1.msra.mxu0 %v793
        %832 = vmatprep.subr.mxu0 0.0
        %833 = vmatpush1.msra.mxu0 %v798
        %834 = vmatprep.subr.mxu0 0.0
        %835 = vmatpush1.msra.mxu0 %v803
        %836 = vmatprep.subr.mxu0 0.0
        %837 = vmatpush1.msra.mxu0 0.0
        %838 = vmatprep.subr.mxu0 0.0
        %839 = vmatpush1.msra.mxu0 0.0
        %840 = vmatprep.subr.mxu0 0.0
        %841 = vmatpush1.msra.mxu0 0.0
        %842 = vmatprep.subr.mxu0 0.0
        %843 = vmatpush1.msra.mxu0 0.0
        %844 = vmatprep.subr.mxu0 0.0
        %845 = vmatpush1.msra.mxu0 0.0
        %846 = vmatprep.subr.mxu0 0.0
        %847 = vmatpush1.msra.mxu0 0.0
        %848 = vmatprep.subr.mxu0 0.0
        %849 = vmatpush1.msra.mxu0 0.0
        %850 = vmatprep.subr.mxu0 0.0
        %851 = vmatpush1.msra.mxu0 0.0
        %852 = vmatprep.subr.mxu0 0.0
        %853 = vmatpush1.msra.mxu0 0.0
        %854 = vmatprep.subr.mxu0 0.0
        %855 = vmatpush1.msra.mxu0 0.0
        %856 = vmatprep.subr.mxu0 0.0
        %857 = vmatpush1.msra.mxu0 0.0
        %858 = vmatprep.subr.mxu0 0.0
        %859 = vmatpush1.msra.mxu0 0.0
        %860 = vmatprep.subr.mxu0 0.0
        %861 = vmatpush1.msra.mxu0 0.0
        %862 = vmatprep.subr.mxu0 0.0
        %863 = vmatpush1.msra.mxu0 0.0
        %864 = vmatprep.subr.mxu0 0.0
        %865 = vmatpush1.msra.mxu0 0.0
        %866 = vmatprep.subr.mxu0 0.0
        %867 = vmatpush1.msra.mxu0 0.0
        %868 = vmatprep.subr.mxu0 0.0
        %869 = vmatpush1.msra.mxu0 0.0
        %870 = vmatprep.subr.mxu0 0.0
        %871 = vmatpush1.msra.mxu0 0.0
        %872 = vmatprep.subr.mxu0 0.0
        %873 = vmatpush1.msra.mxu0 0.0
        %874 = vmatprep.subr.mxu0 0.0
        %875 = vmatpush1.msra.mxu0 0.0
        %876 = vmatprep.subr.mxu0 0.0
        %877 = vmatpush1.msra.mxu0 0.0
        %878 = vmatprep.subr.mxu0 0.0
        %879 = vmatpush1.msra.mxu0 0.0
        %880 = vmatprep.subr.mxu0 0.0
        %881 = vmatpush1.msra.mxu0 0.0
        %882 = vmatprep.subr.mxu0 0.0
        %883 = vmatpush1.msra.mxu0 0.0
        %884 = vmatprep.subr.mxu0 0.0
        %885 = vmatpush1.msra.mxu0 0.0
        %886 = vmatprep.subr.mxu0 0.0
        %887 = vmatpush1.msra.mxu0 0.0
        %888 = vmatprep.subr.mxu0 0.0
        %889 = vmatpush1.msra.mxu0 0.0
        %890 = vmatprep.subr.mxu0 0.0
        %891 = vmatpush1.msra.mxu0 0.0
        %892 = vmatprep.mubr.f32.mxu0 0.0
        %893 = vmatmul.mubr.f32.gmra.mrb[0].mxu0 %v817
        %v894 = vpop.f32.mrb[0].mxu0
        %v895 = vadd.f32 %v812, %v894
        %v896 = vpop.f32.mrb[0].mxu0
        %897 = vmatprep.mubr.f32.mxu0 0.0
        %898 = vmatmul.mubr.f32.gmra.mrb[0].mxu0 %v820
        %v899 = vpop.f32.mrb[0].mxu0
        %v900 = vadd.f32 %v813, %v899
        %v901 = vpop.f32.mrb[0].mxu0
        %902 = vmatprep.mubr.f32.mxu0 0.0
        %903 = vmatmul.mubr.f32.gmra.mrb[0].mxu0 %v823
        %v904 = vpop.f32.mrb[0].mxu0
        %v905 = vadd.f32 %v814, %v904
        %v906 = vpop.f32.mrb[0].mxu0
        %907 = vmatprep.mubr.f32.mxu0 0.0
        %908 = vmatmul.mubr.f32.gmra.mrb[0].mxu0 %v826
        %v909 = vpop.f32.mrb[0].mxu0
        %v910 = vadd.f32 %v815, %v909
        %v911 = vpop.f32.mrb[0].mxu0
        %912 = vdwg.mxu0
        %vm913 = vcmp.ge.f32.partialorder %v895, 0.0
        %vm914 = vcmp.ge.f32.partialorder %v900, 0.0
        %vm915 = vcmp.ge.f32.partialorder %v905, 0.0
        %vm916 = vcmp.ge.f32.partialorder %v910, 0.0
        %v917 = vsel %vm913, 1, 0
        %v918 = vsel %vm914, 1, 0
        %v919 = vsel %vm915, 1, 0
        %v920 = vsel %vm916, 1, 0
        %v921 = vcvt.s32.f32 %v917
        %v922 = vcvt.s32.f32 %v918
        %v923 = vcvt.s32.f32 %v919
        %v924 = vcvt.s32.f32 %v920
        %s925 = scalar_lea.vmem [#allocation5], 256
        %v926 = vld [vmem:[%s925] sm:$0xff]
        %v927 = vld [vmem:[%s925 + $0x8] sm:$0xff]
        %v928 = vld [vmem:[%s925 + $0x10] sm:$0xff]
        %v929 = vld [vmem:[%s925 + $0x18] sm:$0xff]
        %v930 = vld [vmem:[%s925 + $0x20] sm:$0xff]
        %v931 = vld [vmem:[%s925 + $0x28] sm:$0xff]
        %v932 = vld [vmem:[%s925 + $0x30] sm:$0xff]
        %v933 = vld [vmem:[%s925 + $0x38] sm:$0xff]
        %v934 = vld [vmem:[%s925 + $0x40] sm:$0xff]
        %v935 = vld [vmem:[%s925 + $0x48] sm:$0xff]
        %v936 = vld [vmem:[%s925 + $0x50] sm:$0xff]
        %v937 = vld [vmem:[%s925 + $0x58] sm:$0xff]
        %v938 = vld [vmem:[%s925 + $0x60] sm:$0xff]
        %v939 = vld [vmem:[%s925 + $0x68] sm:$0xff]
        %v940 = vld [vmem:[%s925 + $0x70] sm:$0xff]
        %v941 = vld [vmem:[%s925 + $0x78] sm:$0xff]
        %942 = vmatprep.subr.mxu0 0.0
        %943 = vmatpush1.msra.mxu0 %v926
        %944 = vmatprep.subr.mxu0 0.0
        %945 = vmatpush1.msra.mxu0 %v927
        %946 = vmatprep.subr.mxu0 0.0
        %947 = vmatpush1.msra.mxu0 %v928
        %948 = vmatprep.subr.mxu0 0.0
        %949 = vmatpush1.msra.mxu0 %v929
        %950 = vmatprep.subr.mxu0 0.0
        %951 = vmatpush1.msra.mxu0 %v930
        %952 = vmatprep.subr.mxu0 0.0
        %953 = vmatpush1.msra.mxu0 %v931
        %954 = vmatprep.subr.mxu0 0.0
        %955 = vmatpush1.msra.mxu0 %v932
        %956 = vmatprep.subr.mxu0 0.0
        %957 = vmatpush1.msra.mxu0 %v933
        %958 = vmatprep.subr.mxu0 0.0
        %959 = vmatpush1.msra.mxu0 %v934
        %960 = vmatprep.subr.mxu0 0.0
        %961 = vmatpush1.msra.mxu0 %v935
        %962 = vmatprep.subr.mxu0 0.0
        %963 = vmatpush1.msra.mxu0 %v936
        %964 = vmatprep.subr.mxu0 0.0
        %965 = vmatpush1.msra.mxu0 %v937
        %966 = vmatprep.subr.mxu0 0.0
        %967 = vmatpush1.msra.mxu0 %v938
        %968 = vmatprep.subr.mxu0 0.0
        %969 = vmatpush1.msra.mxu0 %v939
        %970 = vmatprep.subr.mxu0 0.0
        %971 = vmatpush1.msra.mxu0 %v940
        %972 = vmatprep.subr.mxu0 0.0
        %973 = vmatpush1.msra.mxu0 %v941
        %974 = vmatprep.subr.mxu0 0.0
        %975 = vmatpush1.msra.mxu0 0.0
        %976 = vmatprep.subr.mxu0 0.0
        %977 = vmatpush1.msra.mxu0 0.0
        %978 = vmatprep.subr.mxu0 0.0
        %979 = vmatpush1.msra.mxu0 0.0
        %980 = vmatprep.subr.mxu0 0.0
        %981 = vmatpush1.msra.mxu0 0.0
        %982 = vmatprep.subr.mxu0 0.0
        %983 = vmatpush1.msra.mxu0 0.0
        %984 = vmatprep.subr.mxu0 0.0
        %985 = vmatpush1.msra.mxu0 0.0
        %986 = vmatprep.subr.mxu0 0.0
        %987 = vmatpush1.msra.mxu0 0.0
        %988 = vmatprep.subr.mxu0 0.0
        %989 = vmatpush1.msra.mxu0 0.0
        %990 = vmatprep.subr.mxu0 0.0
        %991 = vmatpush1.msra.mxu0 0.0
        %992 = vmatprep.subr.mxu0 0.0
        %993 = vmatpush1.msra.mxu0 0.0
        %994 = vmatprep.subr.mxu0 0.0
        %995 = vmatpush1.msra.mxu0 0.0
        %996 = vmatprep.subr.mxu0 0.0
        %997 = vmatpush1.msra.mxu0 0.0
        %998 = vmatprep.subr.mxu0 0.0
        %999 = vmatpush1.msra.mxu0 0.0
        %1000 = vmatprep.subr.mxu0 0.0
        %1001 = vmatpush1.msra.mxu0 0.0
        %1002 = vmatprep.subr.mxu0 0.0
        %1003 = vmatpush1.msra.mxu0 0.0
        %1004 = vmatprep.subr.mxu0 0.0
        %1005 = vmatpush1.msra.mxu0 0.0
        %1006 = vmatprep.mubr.f32.mxu0 0.0
        %1007 = vmatmul.mubr.f32.gmra.mrb[0].mxu0 %v921
        %v1008 = vpop.f32.mrb[0].mxu0
        %v1009 = vadd.f32 0.0, %v1008
        %v1010 = vpop.f32.mrb[0].mxu0
        %1011 = vmatprep.mubr.f32.mxu0 0.0
        %1012 = vmatmul.mubr.f32.gmra.mrb[0].mxu0 %v922
        %v1013 = vpop.f32.mrb[0].mxu0
        %v1014 = vadd.f32 0.0, %v1013
        %v1015 = vpop.f32.mrb[0].mxu0
        %1016 = vmatprep.mubr.f32.mxu0 0.0
        %1017 = vmatmul.mubr.f32.gmra.mrb[0].mxu0 %v923
        %v1018 = vpop.f32.mrb[0].mxu0
        %v1019 = vadd.f32 0.0, %v1018
        %v1020 = vpop.f32.mrb[0].mxu0
        %1021 = vmatprep.mubr.f32.mxu0 0.0
        %1022 = vmatmul.mubr.f32.gmra.mrb[0].mxu0 %v924
        %v1023 = vpop.f32.mrb[0].mxu0
        %v1024 = vadd.f32 0.0, %v1023
        %v1025 = vpop.f32.mrb[0].mxu0
        %1026 = vdwg.mxu0
        %s1027 = scalar_lea.vmem [#allocation7], 64
        %v1028 = vld [vmem:[%s1027] sm:$0xff]
        %v1029 = vld [vmem:[%s1027 + $0x8] sm:$0xff]
        %v1030 = vld [vmem:[%s1027 + $0x10] sm:$0xff]
        %v1031 = vld [vmem:[%s1027 + $0x18] sm:$0xff]
        %s1032 = scalar_lea.vmem [#allocation8], 64
        %v1033 = vld [vmem:[%s1032] sm:$0xff]
        %v1034 = vld [vmem:[%s1032 + $0x8] sm:$0xff]
        %v1035 = vld [vmem:[%s1032 + $0x10] sm:$0xff]
        %v1036 = vld [vmem:[%s1032 + $0x18] sm:$0xff]
        %v1038 = vsel %vm594, %v1028, 0
        %v1041 = vsel %vm594, %v1029, 0
        %v1044 = vsel %vm594, %v1030, 0
        %v1047 = vsel %vm594, %v1031, 0
        %1049 = vmatprep.subr.mxu0 0.0
        %1050 = vmatpush1.msra.mxu0 %v1009
        %1051 = vmatprep.subr.mxu0 0.0
        %1052 = vmatpush1.msra.mxu0 %v1014
        %1053 = vmatprep.subr.mxu0 0.0
        %1054 = vmatpush1.msra.mxu0 %v1019
        %1055 = vmatprep.subr.mxu0 0.0
        %1056 = vmatpush1.msra.mxu0 %v1024
        %1057 = vmatprep.subr.mxu0 0.0
        %1058 = vmatpush1.msra.mxu0 0.0
        %1059 = vmatprep.subr.mxu0 0.0
        %1060 = vmatpush1.msra.mxu0 0.0
        %1061 = vmatprep.subr.mxu0 0.0
        %1062 = vmatpush1.msra.mxu0 0.0
        %1063 = vmatprep.subr.mxu0 0.0
        %1064 = vmatpush1.msra.mxu0 0.0
        %1065 = vmatprep.subr.mxu0 0.0
        %1066 = vmatpush1.msra.mxu0 0.0
        %1067 = vmatprep.subr.mxu0 0.0
        %1068 = vmatpush1.msra.mxu0 0.0
        %1069 = vmatprep.subr.mxu0 0.0
        %1070 = vmatpush1.msra.mxu0 0.0
        %1071 = vmatprep.subr.mxu0 0.0
        %1072 = vmatpush1.msra.mxu0 0.0
        %1073 = vmatprep.subr.mxu0 0.0
        %1074 = vmatpush1.msra.mxu0 0.0
        %1075 = vmatprep.subr.mxu0 0.0
        %1076 = vmatpush1.msra.mxu0 0.0
        %1077 = vmatprep.subr.mxu0 0.0
        %1078 = vmatpush1.msra.mxu0 0.0
        %1079 = vmatprep.subr.mxu0 0.0
        %1080 = vmatpush1.msra.mxu0 0.0
        %1081 = vmatprep.subr.mxu0 0.0
        %1082 = vmatpush1.msra.mxu0 0.0
        %1083 = vmatprep.subr.mxu0 0.0
        %1084 = vmatpush1.msra.mxu0 0.0
        %1085 = vmatprep.subr.mxu0 0.0
        %1086 = vmatpush1.msra.mxu0 0.0
        %1087 = vmatprep.subr.mxu0 0.0
        %1088 = vmatpush1.msra.mxu0 0.0
        %1089 = vmatprep.subr.mxu0 0.0
        %1090 = vmatpush1.msra.mxu0 0.0
        %1091 = vmatprep.subr.mxu0 0.0
        %1092 = vmatpush1.msra.mxu0 0.0
        %1093 = vmatprep.subr.mxu0 0.0
        %1094 = vmatpush1.msra.mxu0 0.0
        %1095 = vmatprep.subr.mxu0 0.0
        %1096 = vmatpush1.msra.mxu0 0.0
        %1097 = vmatprep.subr.mxu0 0.0
        %1098 = vmatpush1.msra.mxu0 0.0
        %1099 = vmatprep.subr.mxu0 0.0
        %1100 = vmatpush1.msra.mxu0 0.0
        %1101 = vmatprep.subr.mxu0 0.0
        %1102 = vmatpush1.msra.mxu0 0.0
        %1103 = vmatprep.subr.mxu0 0.0
        %1104 = vmatpush1.msra.mxu0 0.0
        %1105 = vmatprep.subr.mxu0 0.0
        %1106 = vmatpush1.msra.mxu0 0.0
        %1107 = vmatprep.subr.mxu0 0.0
        %1108 = vmatpush1.msra.mxu0 0.0
        %1109 = vmatprep.subr.mxu0 0.0
        %1110 = vmatpush1.msra.mxu0 0.0
        %1111 = vmatprep.subr.mxu0 0.0
        %1112 = vmatpush1.msra.mxu0 0.0
        %1113 = vmatprep.mubr.f32.mxu0 0.0
        %1114 = vmatmul.mubr.f32.gmra.mrb[0].mxu0 %v1038
        %v1115 = vpop.f32.mrb[0].mxu0
        %v1116 = vadd.f32 %v1033, %v1115
        %v1117 = vpop.f32.mrb[0].mxu0
        %1118 = vmatprep.mubr.f32.mxu0 0.0
        %1119 = vmatmul.mubr.f32.gmra.mrb[0].mxu0 %v1041
        %v1120 = vpop.f32.mrb[0].mxu0
        %v1121 = vadd.f32 %v1034, %v1120
        %v1122 = vpop.f32.mrb[0].mxu0
        %1123 = vmatprep.mubr.f32.mxu0 0.0
        %1124 = vmatmul.mubr.f32.gmra.mrb[0].mxu0 %v1044
        %v1125 = vpop.f32.mrb[0].mxu0
        %v1126 = vadd.f32 %v1035, %v1125
        %v1127 = vpop.f32.mrb[0].mxu0
        %1128 = vmatprep.mubr.f32.mxu0 0.0
        %1129 = vmatmul.mubr.f32.gmra.mrb[0].mxu0 %v1047
        %v1130 = vpop.f32.mrb[0].mxu0
        %v1131 = vadd.f32 %v1036, %v1130
        %v1132 = vpop.f32.mrb[0].mxu0
        %1133 = vdwg.mxu0
        %vm1134 = vcmp.ge.f32.partialorder %v1116, 0.0
        %vm1135 = vcmp.ge.f32.partialorder %v1121, 0.0
        %vm1136 = vcmp.ge.f32.partialorder %v1126, 0.0
        %vm1137 = vcmp.ge.f32.partialorder %v1131, 0.0
        %v1138 = vsel %vm1134, 1, 0
        %v1139 = vsel %vm1135, 1, 0
        %v1140 = vsel %vm1136, 1, 0
        %v1141 = vsel %vm1137, 1, 0
        %v1142 = vcvt.s32.f32 %v1138
        %v1143 = vcvt.s32.f32 %v1139
        %v1144 = vcvt.s32.f32 %v1140
        %v1145 = vcvt.s32.f32 %v1141
        %s1146 = scalar_lea.vmem [#allocation5], 384
        %v1147 = vld [vmem:[%s1146] sm:$0xff]
        %v1148 = vld [vmem:[%s1146 + $0x8] sm:$0xff]
        %v1149 = vld [vmem:[%s1146 + $0x10] sm:$0xff]
        %v1150 = vld [vmem:[%s1146 + $0x18] sm:$0xff]
        %v1151 = vld [vmem:[%s1146 + $0x20] sm:$0xff]
        %v1152 = vld [vmem:[%s1146 + $0x28] sm:$0xff]
        %v1153 = vld [vmem:[%s1146 + $0x30] sm:$0xff]
        %v1154 = vld [vmem:[%s1146 + $0x38] sm:$0xff]
        %v1155 = vld [vmem:[%s1146 + $0x40] sm:$0xff]
        %v1156 = vld [vmem:[%s1146 + $0x48] sm:$0xff]
        %v1157 = vld [vmem:[%s1146 + $0x50] sm:$0xff]
        %v1158 = vld [vmem:[%s1146 + $0x58] sm:$0xff]
        %v1159 = vld [vmem:[%s1146 + $0x60] sm:$0xff]
        %v1160 = vld [vmem:[%s1146 + $0x68] sm:$0xff]
        %v1161 = vld [vmem:[%s1146 + $0x70] sm:$0xff]
        %v1162 = vld [vmem:[%s1146 + $0x78] sm:$0xff]
        %1163 = vmatprep.subr.mxu0 0.0
        %1164 = vmatpush1.msra.mxu0 %v1147
        %1165 = vmatprep.subr.mxu0 0.0
        %1166 = vmatpush1.msra.mxu0 %v1148
        %1167 = vmatprep.subr.mxu0 0.0
        %1168 = vmatpush1.msra.mxu0 %v1149
        %1169 = vmatprep.subr.mxu0 0.0
        %1170 = vmatpush1.msra.mxu0 %v1150
        %1171 = vmatprep.subr.mxu0 0.0
        %1172 = vmatpush1.msra.mxu0 %v1151
        %1173 = vmatprep.subr.mxu0 0.0
        %1174 = vmatpush1.msra.mxu0 %v1152
        %1175 = vmatprep.subr.mxu0 0.0
        %1176 = vmatpush1.msra.mxu0 %v1153
        %1177 = vmatprep.subr.mxu0 0.0
        %1178 = vmatpush1.msra.mxu0 %v1154
        %1179 = vmatprep.subr.mxu0 0.0
        %1180 = vmatpush1.msra.mxu0 %v1155
        %1181 = vmatprep.subr.mxu0 0.0
        %1182 = vmatpush1.msra.mxu0 %v1156
        %1183 = vmatprep.subr.mxu0 0.0
        %1184 = vmatpush1.msra.mxu0 %v1157
        %1185 = vmatprep.subr.mxu0 0.0
        %1186 = vmatpush1.msra.mxu0 %v1158
        %1187 = vmatprep.subr.mxu0 0.0
        %1188 = vmatpush1.msra.mxu0 %v1159
        %1189 = vmatprep.subr.mxu0 0.0
        %1190 = vmatpush1.msra.mxu0 %v1160
        %1191 = vmatprep.subr.mxu0 0.0
        %1192 = vmatpush1.msra.mxu0 %v1161
        %1193 = vmatprep.subr.mxu0 0.0
        %1194 = vmatpush1.msra.mxu0 %v1162
        %1195 = vmatprep.subr.mxu0 0.0
        %1196 = vmatpush1.msra.mxu0 0.0
        %1197 = vmatprep.subr.mxu0 0.0
        %1198 = vmatpush1.msra.mxu0 0.0
        %1199 = vmatprep.subr.mxu0 0.0
        %1200 = vmatpush1.msra.mxu0 0.0
        %1201 = vmatprep.subr.mxu0 0.0
        %1202 = vmatpush1.msra.mxu0 0.0
        %1203 = vmatprep.subr.mxu0 0.0
        %1204 = vmatpush1.msra.mxu0 0.0
        %1205 = vmatprep.subr.mxu0 0.0
        %1206 = vmatpush1.msra.mxu0 0.0
        %1207 = vmatprep.subr.mxu0 0.0
        %1208 = vmatpush1.msra.mxu0 0.0
        %1209 = vmatprep.subr.mxu0 0.0
        %1210 = vmatpush1.msra.mxu0 0.0
        %1211 = vmatprep.subr.mxu0 0.0
        %1212 = vmatpush1.msra.mxu0 0.0
        %1213 = vmatprep.subr.mxu0 0.0
        %1214 = vmatpush1.msra.mxu0 0.0
        %1215 = vmatprep.subr.mxu0 0.0
        %1216 = vmatpush1.msra.mxu0 0.0
        %1217 = vmatprep.subr.mxu0 0.0
        %1218 = vmatpush1.msra.mxu0 0.0
        %1219 = vmatprep.subr.mxu0 0.0
        %1220 = vmatpush1.msra.mxu0 0.0
        %1221 = vmatprep.subr.mxu0 0.0
        %1222 = vmatpush1.msra.mxu0 0.0
        %1223 = vmatprep.subr.mxu0 0.0
        %1224 = vmatpush1.msra.mxu0 0.0
        %1225 = vmatprep.subr.mxu0 0.0
        %1226 = vmatpush1.msra.mxu0 0.0
        %1227 = vmatprep.mubr.f32.mxu0 0.0
        %1228 = vmatmul.mubr.f32.gmra.mrb[0].mxu0 %v1142
        %v1229 = vpop.f32.mrb[0].mxu0
        %v1230 = vadd.f32 0.0, %v1229
        %v1231 = vpop.f32.mrb[0].mxu0
        %1232 = vmatprep.mubr.f32.mxu0 0.0
        %1233 = vmatmul.mubr.f32.gmra.mrb[0].mxu0 %v1143
        %v1234 = vpop.f32.mrb[0].mxu0
        %v1235 = vadd.f32 0.0, %v1234
        %v1236 = vpop.f32.mrb[0].mxu0
        %1237 = vmatprep.mubr.f32.mxu0 0.0
        %1238 = vmatmul.mubr.f32.gmra.mrb[0].mxu0 %v1144
        %v1239 = vpop.f32.mrb[0].mxu0
        %v1240 = vadd.f32 0.0, %v1239
        %v1241 = vpop.f32.mrb[0].mxu0
        %1242 = vmatprep.mubr.f32.mxu0 0.0
        %1243 = vmatmul.mubr.f32.gmra.mrb[0].mxu0 %v1145
        %v1244 = vpop.f32.mrb[0].mxu0
        %v1245 = vadd.f32 0.0, %v1244
        %v1246 = vpop.f32.mrb[0].mxu0
        %1247 = vdwg.mxu0
        %s1248 = scalar_lea.vmem [#allocation7], 96
        %v1249 = vld [vmem:[%s1248] sm:$0xff]
        %v1250 = vld [vmem:[%s1248 + $0x8] sm:$0xff]
        %v1251 = vld [vmem:[%s1248 + $0x10] sm:$0xff]
        %v1252 = vld [vmem:[%s1248 + $0x18] sm:$0xff]
        %s1253 = scalar_lea.vmem [#allocation8], 96
        %v1254 = vld [vmem:[%s1253] sm:$0xff]
        %v1255 = vld [vmem:[%s1253 + $0x8] sm:$0xff]
        %v1256 = vld [vmem:[%s1253 + $0x10] sm:$0xff]
        %v1257 = vld [vmem:[%s1253 + $0x18] sm:$0xff]
        %v1259 = vsel %vm594, %v1249, 0
        %v1262 = vsel %vm594, %v1250, 0
        %v1265 = vsel %vm594, %v1251, 0
        %v1268 = vsel %vm594, %v1252, 0
        %1270 = vmatprep.subr.mxu0 0.0
        %1271 = vmatpush1.msra.mxu0 %v1230
        %1272 = vmatprep.subr.mxu0 0.0
        %1273 = vmatpush1.msra.mxu0 %v1235
        %1274 = vmatprep.subr.mxu0 0.0
        %1275 = vmatpush1.msra.mxu0 %v1240
        %1276 = vmatprep.subr.mxu0 0.0
        %1277 = vmatpush1.msra.mxu0 %v1245
        %1278 = vmatprep.subr.mxu0 0.0
        %1279 = vmatpush1.msra.mxu0 0.0
        %1280 = vmatprep.subr.mxu0 0.0
        %1281 = vmatpush1.msra.mxu0 0.0
        %1282 = vmatprep.subr.mxu0 0.0
        %1283 = vmatpush1.msra.mxu0 0.0
        %1284 = vmatprep.subr.mxu0 0.0
        %1285 = vmatpush1.msra.mxu0 0.0
        %1286 = vmatprep.subr.mxu0 0.0
        %1287 = vmatpush1.msra.mxu0 0.0
        %1288 = vmatprep.subr.mxu0 0.0
        %1289 = vmatpush1.msra.mxu0 0.0
        %1290 = vmatprep.subr.mxu0 0.0
        %1291 = vmatpush1.msra.mxu0 0.0
        %1292 = vmatprep.subr.mxu0 0.0
        %1293 = vmatpush1.msra.mxu0 0.0
        %1294 = vmatprep.subr.mxu0 0.0
        %1295 = vmatpush1.msra.mxu0 0.0
        %1296 = vmatprep.subr.mxu0 0.0
        %1297 = vmatpush1.msra.mxu0 0.0
        %1298 = vmatprep.subr.mxu0 0.0
        %1299 = vmatpush1.msra.mxu0 0.0
        %1300 = vmatprep.subr.mxu0 0.0
        %1301 = vmatpush1.msra.mxu0 0.0
        %1302 = vmatprep.subr.mxu0 0.0
        %1303 = vmatpush1.msra.mxu0 0.0
        %1304 = vmatprep.subr.mxu0 0.0
        %1305 = vmatpush1.msra.mxu0 0.0
        %1306 = vmatprep.subr.mxu0 0.0
        %1307 = vmatpush1.msra.mxu0 0.0
        %1308 = vmatprep.subr.mxu0 0.0
        %1309 = vmatpush1.msra.mxu0 0.0
        %1310 = vmatprep.subr.mxu0 0.0
        %1311 = vmatpush1.msra.mxu0 0.0
        %1312 = vmatprep.subr.mxu0 0.0
        %1313 = vmatpush1.msra.mxu0 0.0
        %1314 = vmatprep.subr.mxu0 0.0
        %1315 = vmatpush1.msra.mxu0 0.0
        %1316 = vmatprep.subr.mxu0 0.0
        %1317 = vmatpush1.msra.mxu0 0.0
        %1318 = vmatprep.subr.mxu0 0.0
        %1319 = vmatpush1.msra.mxu0 0.0
        %1320 = vmatprep.subr.mxu0 0.0
        %1321 = vmatpush1.msra.mxu0 0.0
        %1322 = vmatprep.subr.mxu0 0.0
        %1323 = vmatpush1.msra.mxu0 0.0
        %1324 = vmatprep.subr.mxu0 0.0
        %1325 = vmatpush1.msra.mxu0 0.0
        %1326 = vmatprep.subr.mxu0 0.0
        %1327 = vmatpush1.msra.mxu0 0.0
        %1328 = vmatprep.subr.mxu0 0.0
        %1329 = vmatpush1.msra.mxu0 0.0
        %1330 = vmatprep.subr.mxu0 0.0
        %1331 = vmatpush1.msra.mxu0 0.0
        %1332 = vmatprep.subr.mxu0 0.0
        %1333 = vmatpush1.msra.mxu0 0.0
        %1334 = vmatprep.mubr.f32.mxu0 0.0
        %1335 = vmatmul.mubr.f32.gmra.mrb[0].mxu0 %v1259
        %v1336 = vpop.f32.mrb[0].mxu0
        %v1337 = vadd.f32 %v1254, %v1336
        %v1338 = vpop.f32.mrb[0].mxu0
        %1339 = vmatprep.mubr.f32.mxu0 0.0
        %1340 = vmatmul.mubr.f32.gmra.mrb[0].mxu0 %v1262
        %v1341 = vpop.f32.mrb[0].mxu0
        %v1342 = vadd.f32 %v1255, %v1341
        %v1343 = vpop.f32.mrb[0].mxu0
        %1344 = vmatprep.mubr.f32.mxu0 0.0
        %1345 = vmatmul.mubr.f32.gmra.mrb[0].mxu0 %v1265
        %v1346 = vpop.f32.mrb[0].mxu0
        %v1347 = vadd.f32 %v1256, %v1346
        %v1348 = vpop.f32.mrb[0].mxu0
        %1349 = vmatprep.mubr.f32.mxu0 0.0
        %1350 = vmatmul.mubr.f32.gmra.mrb[0].mxu0 %v1268
        %v1351 = vpop.f32.mrb[0].mxu0
        %v1352 = vadd.f32 %v1257, %v1351
        %v1353 = vpop.f32.mrb[0].mxu0
        %1354 = vdwg.mxu0
        %vm1355 = vcmp.ge.f32.partialorder %v1337, 0.0
        %vm1356 = vcmp.ge.f32.partialorder %v1342, 0.0
        %vm1357 = vcmp.ge.f32.partialorder %v1347, 0.0
        %vm1358 = vcmp.ge.f32.partialorder %v1352, 0.0
        %v1359 = vsel %vm1355, 1, 0
        %v1360 = vsel %vm1356, 1, 0
        %v1361 = vsel %vm1357, 1, 0
        %v1362 = vsel %vm1358, 1, 0
        %v1363 = vcvt.s32.f32 %v1359
        %v1364 = vcvt.s32.f32 %v1360
        %v1365 = vcvt.s32.f32 %v1361
        %v1366 = vcvt.s32.f32 %v1362
        %s1367 = scalar_lea.vmem [#allocation5], 512
        %v1368 = vld [vmem:[%s1367] sm:$0xff]
        %v1369 = vld [vmem:[%s1367 + $0x8] sm:$0xff]
        %v1370 = vld [vmem:[%s1367 + $0x10] sm:$0xff]
        %v1371 = vld [vmem:[%s1367 + $0x18] sm:$0xff]
        %v1372 = vld [vmem:[%s1367 + $0x20] sm:$0xff]
        %v1373 = vld [vmem:[%s1367 + $0x28] sm:$0xff]
        %v1374 = vld [vmem:[%s1367 + $0x30] sm:$0xff]
        %v1375 = vld [vmem:[%s1367 + $0x38] sm:$0xff]
        %v1376 = vld [vmem:[%s1367 + $0x40] sm:$0xff]
        %v1377 = vld [vmem:[%s1367 + $0x48] sm:$0xff]
        %v1378 = vld [vmem:[%s1367 + $0x50] sm:$0xff]
        %v1379 = vld [vmem:[%s1367 + $0x58] sm:$0xff]
        %v1380 = vld [vmem:[%s1367 + $0x60] sm:$0xff]
        %v1381 = vld [vmem:[%s1367 + $0x68] sm:$0xff]
        %v1382 = vld [vmem:[%s1367 + $0x70] sm:$0xff]
        %v1383 = vld [vmem:[%s1367 + $0x78] sm:$0xff]
        %1384 = vmatprep.subr.mxu0 0.0
        %1385 = vmatpush1.msra.mxu0 %v1368
        %1386 = vmatprep.subr.mxu0 0.0
        %1387 = vmatpush1.msra.mxu0 %v1369
        %1388 = vmatprep.subr.mxu0 0.0
        %1389 = vmatpush1.msra.mxu0 %v1370
        %1390 = vmatprep.subr.mxu0 0.0
        %1391 = vmatpush1.msra.mxu0 %v1371
        %1392 = vmatprep.subr.mxu0 0.0
        %1393 = vmatpush1.msra.mxu0 %v1372
        %1394 = vmatprep.subr.mxu0 0.0
        %1395 = vmatpush1.msra.mxu0 %v1373
        %1396 = vmatprep.subr.mxu0 0.0
        %1397 = vmatpush1.msra.mxu0 %v1374
        %1398 = vmatprep.subr.mxu0 0.0
        %1399 = vmatpush1.msra.mxu0 %v1375
        %1400 = vmatprep.subr.mxu0 0.0
        %1401 = vmatpush1.msra.mxu0 %v1376
        %1402 = vmatprep.subr.mxu0 0.0
        %1403 = vmatpush1.msra.mxu0 %v1377
        %1404 = vmatprep.subr.mxu0 0.0
        %1405 = vmatpush1.msra.mxu0 %v1378
        %1406 = vmatprep.subr.mxu0 0.0
        %1407 = vmatpush1.msra.mxu0 %v1379
        %1408 = vmatprep.subr.mxu0 0.0
        %1409 = vmatpush1.msra.mxu0 %v1380
        %1410 = vmatprep.subr.mxu0 0.0
        %1411 = vmatpush1.msra.mxu0 %v1381
        %1412 = vmatprep.subr.mxu0 0.0
        %1413 = vmatpush1.msra.mxu0 %v1382
        %1414 = vmatprep.subr.mxu0 0.0
        %1415 = vmatpush1.msra.mxu0 %v1383
        %1416 = vmatprep.subr.mxu0 0.0
        %1417 = vmatpush1.msra.mxu0 0.0
        %1418 = vmatprep.subr.mxu0 0.0
        %1419 = vmatpush1.msra.mxu0 0.0
        %1420 = vmatprep.subr.mxu0 0.0
        %1421 = vmatpush1.msra.mxu0 0.0
        %1422 = vmatprep.subr.mxu0 0.0
        %1423 = vmatpush1.msra.mxu0 0.0
        %1424 = vmatprep.subr.mxu0 0.0
        %1425 = vmatpush1.msra.mxu0 0.0
        %1426 = vmatprep.subr.mxu0 0.0
        %1427 = vmatpush1.msra.mxu0 0.0
        %1428 = vmatprep.subr.mxu0 0.0
        %1429 = vmatpush1.msra.mxu0 0.0
        %1430 = vmatprep.subr.mxu0 0.0
        %1431 = vmatpush1.msra.mxu0 0.0
        %1432 = vmatprep.subr.mxu0 0.0
        %1433 = vmatpush1.msra.mxu0 0.0
        %1434 = vmatprep.subr.mxu0 0.0
        %1435 = vmatpush1.msra.mxu0 0.0
        %1436 = vmatprep.subr.mxu0 0.0
        %1437 = vmatpush1.msra.mxu0 0.0
        %1438 = vmatprep.subr.mxu0 0.0
        %1439 = vmatpush1.msra.mxu0 0.0
        %1440 = vmatprep.subr.mxu0 0.0
        %1441 = vmatpush1.msra.mxu0 0.0
        %1442 = vmatprep.subr.mxu0 0.0
        %1443 = vmatpush1.msra.mxu0 0.0
        %1444 = vmatprep.subr.mxu0 0.0
        %1445 = vmatpush1.msra.mxu0 0.0
        %1446 = vmatprep.subr.mxu0 0.0
        %1447 = vmatpush1.msra.mxu0 0.0
        %1448 = vmatprep.mubr.f32.mxu0 0.0
        %1449 = vmatmul.mubr.f32.gmra.mrb[0].mxu0 %v1363
        %v1450 = vpop.f32.mrb[0].mxu0
        %v1451 = vadd.f32 0.0, %v1450
        %v1452 = vpop.f32.mrb[0].mxu0
        %1453 = vmatprep.mubr.f32.mxu0 0.0
        %1454 = vmatmul.mubr.f32.gmra.mrb[0].mxu0 %v1364
        %v1455 = vpop.f32.mrb[0].mxu0
        %v1456 = vadd.f32 0.0, %v1455
        %v1457 = vpop.f32.mrb[0].mxu0
        %1458 = vmatprep.mubr.f32.mxu0 0.0
        %1459 = vmatmul.mubr.f32.gmra.mrb[0].mxu0 %v1365
        %v1460 = vpop.f32.mrb[0].mxu0
        %v1461 = vadd.f32 0.0, %v1460
        %v1462 = vpop.f32.mrb[0].mxu0
        %1463 = vmatprep.mubr.f32.mxu0 0.0
        %1464 = vmatmul.mubr.f32.gmra.mrb[0].mxu0 %v1366
        %v1465 = vpop.f32.mrb[0].mxu0
        %v1466 = vadd.f32 0.0, %v1465
        %v1467 = vpop.f32.mrb[0].mxu0
        %1468 = vdwg.mxu0
        %s1469 = scalar_lea.vmem [#allocation7], 128
        %v1470 = vld [vmem:[%s1469] sm:$0xff]
        %v1471 = vld [vmem:[%s1469 + $0x8] sm:$0xff]
        %v1472 = vld [vmem:[%s1469 + $0x10] sm:$0xff]
        %v1473 = vld [vmem:[%s1469 + $0x18] sm:$0xff]
        %s1474 = scalar_lea.vmem [#allocation8], 128
        %v1475 = vld [vmem:[%s1474] sm:$0xff]
        %v1476 = vld [vmem:[%s1474 + $0x8] sm:$0xff]
        %v1477 = vld [vmem:[%s1474 + $0x10] sm:$0xff]
        %v1478 = vld [vmem:[%s1474 + $0x18] sm:$0xff]
        %v1480 = vsel %vm594, %v1470, 0
        %v1483 = vsel %vm594, %v1471, 0
        %v1486 = vsel %vm594, %v1472, 0
        %v1489 = vsel %vm594, %v1473, 0
        %1491 = vmatprep.subr.mxu0 0.0
        %1492 = vmatpush1.msra.mxu0 %v1451
        %1493 = vmatprep.subr.mxu0 0.0
        %1494 = vmatpush1.msra.mxu0 %v1456
        %1495 = vmatprep.subr.mxu0 0.0
        %1496 = vmatpush1.msra.mxu0 %v1461
        %1497 = vmatprep.subr.mxu0 0.0
        %1498 = vmatpush1.msra.mxu0 %v1466
        %1499 = vmatprep.subr.mxu0 0.0
        %1500 = vmatpush1.msra.mxu0 0.0
        %1501 = vmatprep.subr.mxu0 0.0
        %1502 = vmatpush1.msra.mxu0 0.0
        %1503 = vmatprep.subr.mxu0 0.0
        %1504 = vmatpush1.msra.mxu0 0.0
        %1505 = vmatprep.subr.mxu0 0.0
        %1506 = vmatpush1.msra.mxu0 0.0
        %1507 = vmatprep.subr.mxu0 0.0
        %1508 = vmatpush1.msra.mxu0 0.0
        %1509 = vmatprep.subr.mxu0 0.0
        %1510 = vmatpush1.msra.mxu0 0.0
        %1511 = vmatprep.subr.mxu0 0.0
        %1512 = vmatpush1.msra.mxu0 0.0
        %1513 = vmatprep.subr.mxu0 0.0
        %1514 = vmatpush1.msra.mxu0 0.0
        %1515 = vmatprep.subr.mxu0 0.0
        %1516 = vmatpush1.msra.mxu0 0.0
        %1517 = vmatprep.subr.mxu0 0.0
        %1518 = vmatpush1.msra.mxu0 0.0
        %1519 = vmatprep.subr.mxu0 0.0
        %1520 = vmatpush1.msra.mxu0 0.0
        %1521 = vmatprep.subr.mxu0 0.0
        %1522 = vmatpush1.msra.mxu0 0.0
        %1523 = vmatprep.subr.mxu0 0.0
        %1524 = vmatpush1.msra.mxu0 0.0
        %1525 = vmatprep.subr.mxu0 0.0
        %1526 = vmatpush1.msra.mxu0 0.0
        %1527 = vmatprep.subr.mxu0 0.0
        %1528 = vmatpush1.msra.mxu0 0.0
        %1529 = vmatprep.subr.mxu0 0.0
        %1530 = vmatpush1.msra.mxu0 0.0
        %1531 = vmatprep.subr.mxu0 0.0
        %1532 = vmatpush1.msra.mxu0 0.0
        %1533 = vmatprep.subr.mxu0 0.0
        %1534 = vmatpush1.msra.mxu0 0.0
        %1535 = vmatprep.subr.mxu0 0.0
        %1536 = vmatpush1.msra.mxu0 0.0
        %1537 = vmatprep.subr.mxu0 0.0
        %1538 = vmatpush1.msra.mxu0 0.0
        %1539 = vmatprep.subr.mxu0 0.0
        %1540 = vmatpush1.msra.mxu0 0.0
        %1541 = vmatprep.subr.mxu0 0.0
        %1542 = vmatpush1.msra.mxu0 0.0
        %1543 = vmatprep.subr.mxu0 0.0
        %1544 = vmatpush1.msra.mxu0 0.0
        %1545 = vmatprep.subr.mxu0 0.0
        %1546 = vmatpush1.msra.mxu0 0.0
        %1547 = vmatprep.subr.mxu0 0.0
        %1548 = vmatpush1.msra.mxu0 0.0
        %1549 = vmatprep.subr.mxu0 0.0
        %1550 = vmatpush1.msra.mxu0 0.0
        %1551 = vmatprep.subr.mxu0 0.0
        %1552 = vmatpush1.msra.mxu0 0.0
        %1553 = vmatprep.subr.mxu0 0.0
        %1554 = vmatpush1.msra.mxu0 0.0
        %1555 = vmatprep.mubr.f32.mxu0 0.0
        %1556 = vmatmul.mubr.f32.gmra.mrb[0].mxu0 %v1480
        %v1557 = vpop.f32.mrb[0].mxu0
        %v1558 = vadd.f32 %v1475, %v1557
        %v1559 = vpop.f32.mrb[0].mxu0
        %1560 = vmatprep.mubr.f32.mxu0 0.0
        %1561 = vmatmul.mubr.f32.gmra.mrb[0].mxu0 %v1483
        %v1562 = vpop.f32.mrb[0].mxu0
        %v1563 = vadd.f32 %v1476, %v1562
        %v1564 = vpop.f32.mrb[0].mxu0
        %1565 = vmatprep.mubr.f32.mxu0 0.0
        %1566 = vmatmul.mubr.f32.gmra.mrb[0].mxu0 %v1486
        %v1567 = vpop.f32.mrb[0].mxu0
        %v1568 = vadd.f32 %v1477, %v1567
        %v1569 = vpop.f32.mrb[0].mxu0
        %1570 = vmatprep.mubr.f32.mxu0 0.0
        %1571 = vmatmul.mubr.f32.gmra.mrb[0].mxu0 %v1489
        %v1572 = vpop.f32.mrb[0].mxu0
        %v1573 = vadd.f32 %v1478, %v1572
        %v1574 = vpop.f32.mrb[0].mxu0
        %1575 = vdwg.mxu0
        %vm1576 = vcmp.ge.f32.partialorder %v1558, 0.0
        %vm1577 = vcmp.ge.f32.partialorder %v1563, 0.0
        %vm1578 = vcmp.ge.f32.partialorder %v1568, 0.0
        %vm1579 = vcmp.ge.f32.partialorder %v1573, 0.0
        %v1580 = vsel %vm1576, 1, 0
        %v1581 = vsel %vm1577, 1, 0
        %v1582 = vsel %vm1578, 1, 0
        %v1583 = vsel %vm1579, 1, 0
        %v1584 = vcvt.s32.f32 %v1580
        %v1585 = vcvt.s32.f32 %v1581
        %v1586 = vcvt.s32.f32 %v1582
        %v1587 = vcvt.s32.f32 %v1583
        %s1588 = scalar_lea.vmem [#allocation5], 640
        %v1589 = vld [vmem:[%s1588] sm:$0xff]
        %v1590 = vld [vmem:[%s1588 + $0x8] sm:$0xff]
        %v1591 = vld [vmem:[%s1588 + $0x10] sm:$0xff]
        %v1592 = vld [vmem:[%s1588 + $0x18] sm:$0xff]
        %v1593 = vld [vmem:[%s1588 + $0x20] sm:$0xff]
        %v1594 = vld [vmem:[%s1588 + $0x28] sm:$0xff]
        %v1595 = vld [vmem:[%s1588 + $0x30] sm:$0xff]
        %v1596 = vld [vmem:[%s1588 + $0x38] sm:$0xff]
        %v1597 = vld [vmem:[%s1588 + $0x40] sm:$0xff]
        %v1598 = vld [vmem:[%s1588 + $0x48] sm:$0xff]
        %v1599 = vld [vmem:[%s1588 + $0x50] sm:$0xff]
        %v1600 = vld [vmem:[%s1588 + $0x58] sm:$0xff]
        %v1601 = vld [vmem:[%s1588 + $0x60] sm:$0xff]
        %v1602 = vld [vmem:[%s1588 + $0x68] sm:$0xff]
        %v1603 = vld [vmem:[%s1588 + $0x70] sm:$0xff]
        %v1604 = vld [vmem:[%s1588 + $0x78] sm:$0xff]
        %1605 = vmatprep.subr.mxu0 0.0
        %1606 = vmatpush1.msra.mxu0 %v1589
        %1607 = vmatprep.subr.mxu0 0.0
        %1608 = vmatpush1.msra.mxu0 %v1590
        %1609 = vmatprep.subr.mxu0 0.0
        %1610 = vmatpush1.msra.mxu0 %v1591
        %1611 = vmatprep.subr.mxu0 0.0
        %1612 = vmatpush1.msra.mxu0 %v1592
        %1613 = vmatprep.subr.mxu0 0.0
        %1614 = vmatpush1.msra.mxu0 %v1593
        %1615 = vmatprep.subr.mxu0 0.0
        %1616 = vmatpush1.msra.mxu0 %v1594
        %1617 = vmatprep.subr.mxu0 0.0
        %1618 = vmatpush1.msra.mxu0 %v1595
        %1619 = vmatprep.subr.mxu0 0.0
        %1620 = vmatpush1.msra.mxu0 %v1596
        %1621 = vmatprep.subr.mxu0 0.0
        %1622 = vmatpush1.msra.mxu0 %v1597
        %1623 = vmatprep.subr.mxu0 0.0
        %1624 = vmatpush1.msra.mxu0 %v1598
        %1625 = vmatprep.subr.mxu0 0.0
        %1626 = vmatpush1.msra.mxu0 %v1599
        %1627 = vmatprep.subr.mxu0 0.0
        %1628 = vmatpush1.msra.mxu0 %v1600
        %1629 = vmatprep.subr.mxu0 0.0
        %1630 = vmatpush1.msra.mxu0 %v1601
        %1631 = vmatprep.subr.mxu0 0.0
        %1632 = vmatpush1.msra.mxu0 %v1602
        %1633 = vmatprep.subr.mxu0 0.0
        %1634 = vmatpush1.msra.mxu0 %v1603
        %1635 = vmatprep.subr.mxu0 0.0
        %1636 = vmatpush1.msra.mxu0 %v1604
        %1637 = vmatprep.subr.mxu0 0.0
        %1638 = vmatpush1.msra.mxu0 0.0
        %1639 = vmatprep.subr.mxu0 0.0
        %1640 = vmatpush1.msra.mxu0 0.0
        %1641 = vmatprep.subr.mxu0 0.0
        %1642 = vmatpush1.msra.mxu0 0.0
        %1643 = vmatprep.subr.mxu0 0.0
        %1644 = vmatpush1.msra.mxu0 0.0
        %1645 = vmatprep.subr.mxu0 0.0
        %1646 = vmatpush1.msra.mxu0 0.0
        %1647 = vmatprep.subr.mxu0 0.0
        %1648 = vmatpush1.msra.mxu0 0.0
        %1649 = vmatprep.subr.mxu0 0.0
        %1650 = vmatpush1.msra.mxu0 0.0
        %1651 = vmatprep.subr.mxu0 0.0
        %1652 = vmatpush1.msra.mxu0 0.0
        %1653 = vmatprep.subr.mxu0 0.0
        %1654 = vmatpush1.msra.mxu0 0.0
        %1655 = vmatprep.subr.mxu0 0.0
        %1656 = vmatpush1.msra.mxu0 0.0
        %1657 = vmatprep.subr.mxu0 0.0
        %1658 = vmatpush1.msra.mxu0 0.0
        %1659 = vmatprep.subr.mxu0 0.0
        %1660 = vmatpush1.msra.mxu0 0.0
        %1661 = vmatprep.subr.mxu0 0.0
        %1662 = vmatpush1.msra.mxu0 0.0
        %1663 = vmatprep.subr.mxu0 0.0
        %1664 = vmatpush1.msra.mxu0 0.0
        %1665 = vmatprep.subr.mxu0 0.0
        %1666 = vmatpush1.msra.mxu0 0.0
        %1667 = vmatprep.subr.mxu0 0.0
        %1668 = vmatpush1.msra.mxu0 0.0
        %1669 = vmatprep.mubr.f32.mxu0 0.0
        %1670 = vmatmul.mubr.f32.gmra.mrb[0].mxu0 %v1584
        %v1671 = vpop.f32.mrb[0].mxu0
        %v1672 = vadd.f32 0.0, %v1671
        %v1673 = vpop.f32.mrb[0].mxu0
        %1674 = vmatprep.mubr.f32.mxu0 0.0
        %1675 = vmatmul.mubr.f32.gmra.mrb[0].mxu0 %v1585
        %v1676 = vpop.f32.mrb[0].mxu0
        %v1677 = vadd.f32 0.0, %v1676
        %v1678 = vpop.f32.mrb[0].mxu0
        %1679 = vmatprep.mubr.f32.mxu0 0.0
        %1680 = vmatmul.mubr.f32.gmra.mrb[0].mxu0 %v1586
        %v1681 = vpop.f32.mrb[0].mxu0
        %v1682 = vadd.f32 0.0, %v1681
        %v1683 = vpop.f32.mrb[0].mxu0
        %1684 = vmatprep.mubr.f32.mxu0 0.0
        %1685 = vmatmul.mubr.f32.gmra.mrb[0].mxu0 %v1587
        %v1686 = vpop.f32.mrb[0].mxu0
        %v1687 = vadd.f32 0.0, %v1686
        %v1688 = vpop.f32.mrb[0].mxu0
        %1689 = vdwg.mxu0
        %s1690 = scalar_lea.vmem [#allocation7], 160
        %v1691 = vld [vmem:[%s1690] sm:$0xff]
        %v1692 = vld [vmem:[%s1690 + $0x8] sm:$0xff]
        %v1693 = vld [vmem:[%s1690 + $0x10] sm:$0xff]
        %v1694 = vld [vmem:[%s1690 + $0x18] sm:$0xff]
        %s1695 = scalar_lea.vmem [#allocation8], 160
        %v1696 = vld [vmem:[%s1695] sm:$0xff]
        %v1697 = vld [vmem:[%s1695 + $0x8] sm:$0xff]
        %v1698 = vld [vmem:[%s1695 + $0x10] sm:$0xff]
        %v1699 = vld [vmem:[%s1695 + $0x18] sm:$0xff]
        %v1701 = vsel %vm594, %v1691, 0
        %v1704 = vsel %vm594, %v1692, 0
        %v1707 = vsel %vm594, %v1693, 0
        %v1710 = vsel %vm594, %v1694, 0
        %1712 = vmatprep.subr.mxu0 0.0
        %1713 = vmatpush1.msra.mxu0 %v1672
        %1714 = vmatprep.subr.mxu0 0.0
        %1715 = vmatpush1.msra.mxu0 %v1677
        %1716 = vmatprep.subr.mxu0 0.0
        %1717 = vmatpush1.msra.mxu0 %v1682
        %1718 = vmatprep.subr.mxu0 0.0
        %1719 = vmatpush1.msra.mxu0 %v1687
        %1720 = vmatprep.subr.mxu0 0.0
        %1721 = vmatpush1.msra.mxu0 0.0
        %1722 = vmatprep.subr.mxu0 0.0
        %1723 = vmatpush1.msra.mxu0 0.0
        %1724 = vmatprep.subr.mxu0 0.0
        %1725 = vmatpush1.msra.mxu0 0.0
        %1726 = vmatprep.subr.mxu0 0.0
        %1727 = vmatpush1.msra.mxu0 0.0
        %1728 = vmatprep.subr.mxu0 0.0
        %1729 = vmatpush1.msra.mxu0 0.0
        %1730 = vmatprep.subr.mxu0 0.0
        %1731 = vmatpush1.msra.mxu0 0.0
        %1732 = vmatprep.subr.mxu0 0.0
        %1733 = vmatpush1.msra.mxu0 0.0
        %1734 = vmatprep.subr.mxu0 0.0
        %1735 = vmatpush1.msra.mxu0 0.0
        %1736 = vmatprep.subr.mxu0 0.0
        %1737 = vmatpush1.msra.mxu0 0.0
        %1738 = vmatprep.subr.mxu0 0.0
        %1739 = vmatpush1.msra.mxu0 0.0
        %1740 = vmatprep.subr.mxu0 0.0
        %1741 = vmatpush1.msra.mxu0 0.0
        %1742 = vmatprep.subr.mxu0 0.0
        %1743 = vmatpush1.msra.mxu0 0.0
        %1744 = vmatprep.subr.mxu0 0.0
        %1745 = vmatpush1.msra.mxu0 0.0
        %1746 = vmatprep.subr.mxu0 0.0
        %1747 = vmatpush1.msra.mxu0 0.0
        %1748 = vmatprep.subr.mxu0 0.0
        %1749 = vmatpush1.msra.mxu0 0.0
        %1750 = vmatprep.subr.mxu0 0.0
        %1751 = vmatpush1.msra.mxu0 0.0
        %1752 = vmatprep.subr.mxu0 0.0
        %1753 = vmatpush1.msra.mxu0 0.0
        %1754 = vmatprep.subr.mxu0 0.0
        %1755 = vmatpush1.msra.mxu0 0.0
        %1756 = vmatprep.subr.mxu0 0.0
        %1757 = vmatpush1.msra.mxu0 0.0
        %1758 = vmatprep.subr.mxu0 0.0
        %1759 = vmatpush1.msra.mxu0 0.0
        %1760 = vmatprep.subr.mxu0 0.0
        %1761 = vmatpush1.msra.mxu0 0.0
        %1762 = vmatprep.subr.mxu0 0.0
        %1763 = vmatpush1.msra.mxu0 0.0
        %1764 = vmatprep.subr.mxu0 0.0
        %1765 = vmatpush1.msra.mxu0 0.0
        %1766 = vmatprep.subr.mxu0 0.0
        %1767 = vmatpush1.msra.mxu0 0.0
        %1768 = vmatprep.subr.mxu0 0.0
        %1769 = vmatpush1.msra.mxu0 0.0
        %1770 = vmatprep.subr.mxu0 0.0
        %1771 = vmatpush1.msra.mxu0 0.0
        %1772 = vmatprep.subr.mxu0 0.0
        %1773 = vmatpush1.msra.mxu0 0.0
        %1774 = vmatprep.subr.mxu0 0.0
        %1775 = vmatpush1.msra.mxu0 0.0
        %1776 = vmatprep.mubr.f32.mxu0 0.0
        %1777 = vmatmul.mubr.f32.gmra.mrb[0].mxu0 %v1701
        %v1778 = vpop.f32.mrb[0].mxu0
        %v1779 = vadd.f32 %v1696, %v1778
        %v1780 = vpop.f32.mrb[0].mxu0
        %1781 = vmatprep.mubr.f32.mxu0 0.0
        %1782 = vmatmul.mubr.f32.gmra.mrb[0].mxu0 %v1704
        %v1783 = vpop.f32.mrb[0].mxu0
        %v1784 = vadd.f32 %v1697, %v1783
        %v1785 = vpop.f32.mrb[0].mxu0
        %1786 = vmatprep.mubr.f32.mxu0 0.0
        %1787 = vmatmul.mubr.f32.gmra.mrb[0].mxu0 %v1707
        %v1788 = vpop.f32.mrb[0].mxu0
        %v1789 = vadd.f32 %v1698, %v1788
        %v1790 = vpop.f32.mrb[0].mxu0
        %1791 = vmatprep.mubr.f32.mxu0 0.0
        %1792 = vmatmul.mubr.f32.gmra.mrb[0].mxu0 %v1710
        %v1793 = vpop.f32.mrb[0].mxu0
        %v1794 = vadd.f32 %v1699, %v1793
        %v1795 = vpop.f32.mrb[0].mxu0
        %1796 = vdwg.mxu0
        %vm1797 = vcmp.ge.f32.partialorder %v1779, 0.0
        %vm1798 = vcmp.ge.f32.partialorder %v1784, 0.0
        %vm1799 = vcmp.ge.f32.partialorder %v1789, 0.0
        %vm1800 = vcmp.ge.f32.partialorder %v1794, 0.0
        %v1801 = vsel %vm1797, 1, 0
        %v1802 = vsel %vm1798, 1, 0
        %v1803 = vsel %vm1799, 1, 0
        %v1804 = vsel %vm1800, 1, 0
        %v1805 = vcvt.s32.f32 %v1801
        %v1806 = vcvt.s32.f32 %v1802
        %v1807 = vcvt.s32.f32 %v1803
        %v1808 = vcvt.s32.f32 %v1804
        %v1809 = vld [vmem:[#allocation10] sm:$0xff]
        %v1810 = vld [vmem:[#allocation10 + $0x8] sm:$0xff]
        %v1811 = vld [vmem:[#allocation10 + $0x10] sm:$0xff]
        %v1812 = vld [vmem:[#allocation10 + $0x18] sm:$0xff]
        %v1813 = vld [vmem:[#allocation10 + $0x20] sm:$0xff]
        %v1814 = vld [vmem:[#allocation10 + $0x28] sm:$0xff]
        %v1815 = vld [vmem:[#allocation10 + $0x30] sm:$0xff]
        %v1816 = vld [vmem:[#allocation10 + $0x38] sm:$0xff]
        %v1817 = vld [vmem:[#allocation10 + $0x40] sm:$0xff]
        %v1818 = vld [vmem:[#allocation10 + $0x48] sm:$0xff]
        %v1819 = vld [vmem:[#allocation10 + $0x50] sm:$0xff]
        %v1820 = vld [vmem:[#allocation10 + $0x58] sm:$0xff]
        %v1821 = vld [vmem:[#allocation10 + $0x60] sm:$0xff]
        %v1822 = vld [vmem:[#allocation10 + $0x68] sm:$0xff]
        %v1823 = vld [vmem:[#allocation10 + $0x70] sm:$0xff]
        %v1824 = vld [vmem:[#allocation10 + $0x78] sm:$0xff]
        %1825 = vmatprep.subr.mxu0 0.0
        %1826 = vmatpush1.msra.mxu0 %v1809
        %1827 = vmatprep.subr.mxu0 0.0
        %1828 = vmatpush1.msra.mxu0 %v1810
        %1829 = vmatprep.subr.mxu0 0.0
        %1830 = vmatpush1.msra.mxu0 %v1811
        %1831 = vmatprep.subr.mxu0 0.0
        %1832 = vmatpush1.msra.mxu0 %v1812
        %1833 = vmatprep.subr.mxu0 0.0
        %1834 = vmatpush1.msra.mxu0 %v1813
        %1835 = vmatprep.subr.mxu0 0.0
        %1836 = vmatpush1.msra.mxu0 %v1814
        %1837 = vmatprep.subr.mxu0 0.0
        %1838 = vmatpush1.msra.mxu0 %v1815
        %1839 = vmatprep.subr.mxu0 0.0
        %1840 = vmatpush1.msra.mxu0 %v1816
        %1841 = vmatprep.subr.mxu0 0.0
        %1842 = vmatpush1.msra.mxu0 %v1817
        %1843 = vmatprep.subr.mxu0 0.0
        %1844 = vmatpush1.msra.mxu0 %v1818
        %1845 = vmatprep.subr.mxu0 0.0
        %1846 = vmatpush1.msra.mxu0 %v1819
        %1847 = vmatprep.subr.mxu0 0.0
        %1848 = vmatpush1.msra.mxu0 %v1820
        %1849 = vmatprep.subr.mxu0 0.0
        %1850 = vmatpush1.msra.mxu0 %v1821
        %1851 = vmatprep.subr.mxu0 0.0
        %1852 = vmatpush1.msra.mxu0 %v1822
        %1853 = vmatprep.subr.mxu0 0.0
        %1854 = vmatpush1.msra.mxu0 %v1823
        %1855 = vmatprep.subr.mxu0 0.0
        %1856 = vmatpush1.msra.mxu0 %v1824
        %1857 = vmatprep.subr.mxu0 0.0
        %1858 = vmatpush1.msra.mxu0 0.0
        %1859 = vmatprep.subr.mxu0 0.0
        %1860 = vmatpush1.msra.mxu0 0.0
        %1861 = vmatprep.subr.mxu0 0.0
        %1862 = vmatpush1.msra.mxu0 0.0
        %1863 = vmatprep.subr.mxu0 0.0
        %1864 = vmatpush1.msra.mxu0 0.0
        %1865 = vmatprep.subr.mxu0 0.0
        %1866 = vmatpush1.msra.mxu0 0.0
        %1867 = vmatprep.subr.mxu0 0.0
        %1868 = vmatpush1.msra.mxu0 0.0
        %1869 = vmatprep.subr.mxu0 0.0
        %1870 = vmatpush1.msra.mxu0 0.0
        %1871 = vmatprep.subr.mxu0 0.0
        %1872 = vmatpush1.msra.mxu0 0.0
        %1873 = vmatprep.subr.mxu0 0.0
        %1874 = vmatpush1.msra.mxu0 0.0
        %1875 = vmatprep.subr.mxu0 0.0
        %1876 = vmatpush1.msra.mxu0 0.0
        %1877 = vmatprep.subr.mxu0 0.0
        %1878 = vmatpush1.msra.mxu0 0.0
        %1879 = vmatprep.subr.mxu0 0.0
        %1880 = vmatpush1.msra.mxu0 0.0
        %1881 = vmatprep.subr.mxu0 0.0
        %1882 = vmatpush1.msra.mxu0 0.0
        %1883 = vmatprep.subr.mxu0 0.0
        %1884 = vmatpush1.msra.mxu0 0.0
        %1885 = vmatprep.subr.mxu0 0.0
        %1886 = vmatpush1.msra.mxu0 0.0
        %1887 = vmatprep.subr.mxu0 0.0
        %1888 = vmatpush1.msra.mxu0 0.0
        %1889 = vmatprep.mubr.f32.mxu0 0.0
        %1890 = vmatmul.mubr.f32.gmra.mrb[0].mxu0 %v1805
        %v1891 = vpop.f32.mrb[0].mxu0
        %v1892 = vadd.f32 0.0, %v1891
        %v1893 = vpop.f32.mrb[0].mxu0
        %1894 = vmatprep.mubr.f32.mxu0 0.0
        %1895 = vmatmul.mubr.f32.gmra.mrb[0].mxu0 %v1806
        %v1896 = vpop.f32.mrb[0].mxu0
        %v1897 = vadd.f32 0.0, %v1896
        %v1898 = vpop.f32.mrb[0].mxu0
        %1899 = vmatprep.mubr.f32.mxu0 0.0
        %1900 = vmatmul.mubr.f32.gmra.mrb[0].mxu0 %v1807
        %v1901 = vpop.f32.mrb[0].mxu0
        %v1902 = vadd.f32 0.0, %v1901
        %v1903 = vpop.f32.mrb[0].mxu0
        %1904 = vmatprep.mubr.f32.mxu0 0.0
        %1905 = vmatmul.mubr.f32.gmra.mrb[0].mxu0 %v1808
        %v1906 = vpop.f32.mrb[0].mxu0
        %v1907 = vadd.f32 0.0, %v1906
        %v1908 = vpop.f32.mrb[0].mxu0
        %1909 = vdwg.mxu0
        %v1910 = vld [vmem:[#allocation11] sm:$0xff]
        %v1911 = vld [vmem:[#allocation11 + $0x8] sm:$0xff]
        %v1912 = vld [vmem:[#allocation11 + $0x10] sm:$0xff]
        %v1913 = vld [vmem:[#allocation11 + $0x18] sm:$0xff]
        %v1914 = vld [vmem:[#allocation13] sm:$0xff]
        %v1915 = vld [vmem:[#allocation13 + $0x8] sm:$0xff]
        %v1916 = vld [vmem:[#allocation13 + $0x10] sm:$0xff]
        %v1917 = vld [vmem:[#allocation13 + $0x18] sm:$0xff]
        %v1919 = vsel %vm594, %v1910, 0
        %v1922 = vsel %vm594, %v1911, 0
        %v1925 = vsel %vm594, %v1912, 0
        %v1928 = vsel %vm594, %v1913, 0
        %1930 = vmatprep.subr.mxu0 0.0
        %1931 = vmatpush1.msra.mxu0 %v1892
        %1932 = vmatprep.subr.mxu0 0.0
        %1933 = vmatpush1.msra.mxu0 %v1897
        %1934 = vmatprep.subr.mxu0 0.0
        %1935 = vmatpush1.msra.mxu0 %v1902
        %1936 = vmatprep.subr.mxu0 0.0
        %1937 = vmatpush1.msra.mxu0 %v1907
        %1938 = vmatprep.subr.mxu0 0.0
        %1939 = vmatpush1.msra.mxu0 0.0
        %1940 = vmatprep.subr.mxu0 0.0
        %1941 = vmatpush1.msra.mxu0 0.0
        %1942 = vmatprep.subr.mxu0 0.0
        %1943 = vmatpush1.msra.mxu0 0.0
        %1944 = vmatprep.subr.mxu0 0.0
        %1945 = vmatpush1.msra.mxu0 0.0
        %1946 = vmatprep.subr.mxu0 0.0
        %1947 = vmatpush1.msra.mxu0 0.0
        %1948 = vmatprep.subr.mxu0 0.0
        %1949 = vmatpush1.msra.mxu0 0.0
        %1950 = vmatprep.subr.mxu0 0.0
        %1951 = vmatpush1.msra.mxu0 0.0
        %1952 = vmatprep.subr.mxu0 0.0
        %1953 = vmatpush1.msra.mxu0 0.0
        %1954 = vmatprep.subr.mxu0 0.0
        %1955 = vmatpush1.msra.mxu0 0.0
        %1956 = vmatprep.subr.mxu0 0.0
        %1957 = vmatpush1.msra.mxu0 0.0
        %1958 = vmatprep.subr.mxu0 0.0
        %1959 = vmatpush1.msra.mxu0 0.0
        %1960 = vmatprep.subr.mxu0 0.0
        %1961 = vmatpush1.msra.mxu0 0.0
        %1962 = vmatprep.subr.mxu0 0.0
        %1963 = vmatpush1.msra.mxu0 0.0
        %1964 = vmatprep.subr.mxu0 0.0
        %1965 = vmatpush1.msra.mxu0 0.0
        %1966 = vmatprep.subr.mxu0 0.0
        %1967 = vmatpush1.msra.mxu0 0.0
        %1968 = vmatprep.subr.mxu0 0.0
        %1969 = vmatpush1.msra.mxu0 0.0
        %1970 = vmatprep.subr.mxu0 0.0
        %1971 = vmatpush1.msra.mxu0 0.0
        %1972 = vmatprep.subr.mxu0 0.0
        %1973 = vmatpush1.msra.mxu0 0.0
        %1974 = vmatprep.subr.mxu0 0.0
        %1975 = vmatpush1.msra.mxu0 0.0
        %1976 = vmatprep.subr.mxu0 0.0
        %1977 = vmatpush1.msra.mxu0 0.0
        %1978 = vmatprep.subr.mxu0 0.0
        %1979 = vmatpush1.msra.mxu0 0.0
        %1980 = vmatprep.subr.mxu0 0.0
        %1981 = vmatpush1.msra.mxu0 0.0
        %1982 = vmatprep.subr.mxu0 0.0
        %1983 = vmatpush1.msra.mxu0 0.0
        %1984 = vmatprep.subr.mxu0 0.0
        %1985 = vmatpush1.msra.mxu0 0.0
        %1986 = vmatprep.subr.mxu0 0.0
        %1987 = vmatpush1.msra.mxu0 0.0
        %1988 = vmatprep.subr.mxu0 0.0
        %1989 = vmatpush1.msra.mxu0 0.0
        %1990 = vmatprep.subr.mxu0 0.0
        %1991 = vmatpush1.msra.mxu0 0.0
        %1992 = vmatprep.subr.mxu0 0.0
        %1993 = vmatpush1.msra.mxu0 0.0
        %1994 = vmatprep.mubr.f32.mxu0 0.0
        %1995 = vmatmul.mubr.f32.gmra.mrb[0].mxu0 %v1919
        %v1996 = vpop.f32.mrb[0].mxu0
        %v1997 = vadd.f32 %v1914, %v1996
        %v1998 = vpop.f32.mrb[0].mxu0
        %1999 = vmatprep.mubr.f32.mxu0 0.0
        %2000 = vmatmul.mubr.f32.gmra.mrb[0].mxu0 %v1922
        %v2001 = vpop.f32.mrb[0].mxu0
        %v2002 = vadd.f32 %v1915, %v2001
        %v2003 = vpop.f32.mrb[0].mxu0
        %2004 = vmatprep.mubr.f32.mxu0 0.0
        %2005 = vmatmul.mubr.f32.gmra.mrb[0].mxu0 %v1925
        %v2006 = vpop.f32.mrb[0].mxu0
        %v2007 = vadd.f32 %v1916, %v2006
        %v2008 = vpop.f32.mrb[0].mxu0
        %2009 = vmatprep.mubr.f32.mxu0 0.0
        %2010 = vmatmul.mubr.f32.gmra.mrb[0].mxu0 %v1928
        %v2011 = vpop.f32.mrb[0].mxu0
        %v2012 = vadd.f32 %v1917, %v2011
        %v2013 = vpop.f32.mrb[0].mxu0
        %2014 = vdwg.mxu0
        %vm2015 = vcmp.ge.f32.partialorder %v1997, 0.0
        %vm2016 = vcmp.ge.f32.partialorder %v2002, 0.0
        %vm2017 = vcmp.ge.f32.partialorder %v2007, 0.0
        %vm2018 = vcmp.ge.f32.partialorder %v2012, 0.0
        %v2019 = vsel %vm2015, 1, 0
        %v2020 = vsel %vm2016, 1, 0
        %v2021 = vsel %vm2017, 1, 0
        %v2022 = vsel %vm2018, 1, 0
        %v2023 = vcvt.s32.f32 %v2019
        %v2024 = vcvt.s32.f32 %v2020
        %v2025 = vcvt.s32.f32 %v2021
        %v2026 = vcvt.s32.f32 %v2022
        %v2027 = vld [vmem:[%s7] sm:$0xf]
        %v2029 = vsel %vm594, %v2027, 0
        %2031 = vmatprep.subr.mxu0 0.0
        %2032 = vmatpush1.msra.mxu0 %v2023
        %2033 = vmatprep.subr.mxu0 0.0
        %2034 = vmatpush1.msra.mxu0 %v2024
        %2035 = vmatprep.subr.mxu0 0.0
        %2036 = vmatpush1.msra.mxu0 %v2025
        %2037 = vmatprep.subr.mxu0 0.0
        %2038 = vmatpush1.msra.mxu0 %v2026
        %2039 = vmatprep.subr.mxu0 0.0
        %2040 = vmatpush1.msra.mxu0 0.0
        %2041 = vmatprep.subr.mxu0 0.0
        %2042 = vmatpush1.msra.mxu0 0.0
        %2043 = vmatprep.subr.mxu0 0.0
        %2044 = vmatpush1.msra.mxu0 0.0
        %2045 = vmatprep.subr.mxu0 0.0
        %2046 = vmatpush1.msra.mxu0 0.0
        %2047 = vmatprep.subr.mxu0 0.0
        %2048 = vmatpush1.msra.mxu0 0.0
        %2049 = vmatprep.subr.mxu0 0.0
        %2050 = vmatpush1.msra.mxu0 0.0
        %2051 = vmatprep.subr.mxu0 0.0
        %2052 = vmatpush1.msra.mxu0 0.0
        %2053 = vmatprep.subr.mxu0 0.0
        %2054 = vmatpush1.msra.mxu0 0.0
        %2055 = vmatprep.subr.mxu0 0.0
        %2056 = vmatpush1.msra.mxu0 0.0
        %2057 = vmatprep.subr.mxu0 0.0
        %2058 = vmatpush1.msra.mxu0 0.0
        %2059 = vmatprep.subr.mxu0 0.0
        %2060 = vmatpush1.msra.mxu0 0.0
        %2061 = vmatprep.subr.mxu0 0.0
        %2062 = vmatpush1.msra.mxu0 0.0
        %2063 = vmatprep.subr.mxu0 0.0
        %2064 = vmatpush1.msra.mxu0 0.0
        %2065 = vmatprep.subr.mxu0 0.0
        %2066 = vmatpush1.msra.mxu0 0.0
        %2067 = vmatprep.subr.mxu0 0.0
        %2068 = vmatpush1.msra.mxu0 0.0
        %2069 = vmatprep.subr.mxu0 0.0
        %2070 = vmatpush1.msra.mxu0 0.0
        %2071 = vmatprep.subr.mxu0 0.0
        %2072 = vmatpush1.msra.mxu0 0.0
        %2073 = vmatprep.subr.mxu0 0.0
        %2074 = vmatpush1.msra.mxu0 0.0
        %2075 = vmatprep.subr.mxu0 0.0
        %2076 = vmatpush1.msra.mxu0 0.0
        %2077 = vmatprep.subr.mxu0 0.0
        %2078 = vmatpush1.msra.mxu0 0.0
        %2079 = vmatprep.subr.mxu0 0.0
        %2080 = vmatpush1.msra.mxu0 0.0
        %2081 = vmatprep.subr.mxu0 0.0
        %2082 = vmatpush1.msra.mxu0 0.0
        %2083 = vmatprep.subr.mxu0 0.0
        %2084 = vmatpush1.msra.mxu0 0.0
        %2085 = vmatprep.subr.mxu0 0.0
        %2086 = vmatpush1.msra.mxu0 0.0
        %2087 = vmatprep.subr.mxu0 0.0
        %2088 = vmatpush1.msra.mxu0 0.0
        %2089 = vmatprep.subr.mxu0 0.0
        %2090 = vmatpush1.msra.mxu0 0.0
        %2091 = vmatprep.subr.mxu0 0.0
        %2092 = vmatpush1.msra.mxu0 0.0
        %2093 = vmatprep.subr.mxu0 0.0
        %2094 = vmatpush1.msra.mxu0 0.0
        %2095 = vmatprep.mubr.f32.mxu0 0.0
        %2096 = vmatmul.mubr.f32.gmra.mrb[0].mxu0 %v2029
        %v2097 = vpop.f32.mrb[0].mxu0
        %v2098 = vadd.f32 0.0, %v2097
        %v2099 = vpop.f32.mrb[0].mxu0
        %2100 = vdwg.mxu0
        %v2101 = vld [vmem:[#allocation14] sm:$0xff]
        %v2102 = vld [vmem:[#allocation14 + $0x8] sm:$0xff]
        %v2103 = vld [vmem:[#allocation14 + $0x10] sm:$0xff]
        %v2104 = vld [vmem:[#allocation14 + $0x18] sm:$0xff]
        %v2105 = vld [vmem:[#allocation14 + $0x20] sm:$0xff]
        %v2106 = vld [vmem:[#allocation14 + $0x28] sm:$0xff]
        %v2107 = vld [vmem:[#allocation14 + $0x30] sm:$0xff]
        %v2108 = vld [vmem:[#allocation14 + $0x38] sm:$0xff]
        %v2109 = vld [vmem:[#allocation14 + $0x40] sm:$0xff]
        %v2110 = vld [vmem:[#allocation14 + $0x48] sm:$0xff]
        %v2111 = vld [vmem:[#allocation14 + $0x50] sm:$0xff]
        %v2112 = vld [vmem:[#allocation14 + $0x58] sm:$0xff]
        %v2113 = vld [vmem:[#allocation14 + $0x60] sm:$0xff]
        %v2114 = vld [vmem:[#allocation14 + $0x68] sm:$0xff]
        %v2115 = vld [vmem:[#allocation14 + $0x70] sm:$0xff]
        %v2116 = vld [vmem:[#allocation14 + $0x78] sm:$0xff]
        %v2117 = vld [vmem:[%s9] sm:$0x1]
        %v2119 = vlaneseq
        %v2120 = vshrl.u32 %v2119, 7
        %v2121 = vsub.s32 0, %v2120
        %v2122 = vrot.slane %v2117, %v2121
        %2124 = vmatprep.subr.mxu0 0.0
        %2125 = vmatpush1.msra.mxu0 %v2101
        %2126 = vmatprep.subr.mxu0 0.0
        %2127 = vmatpush1.msra.mxu0 %v2102
        %2128 = vmatprep.subr.mxu0 0.0
        %2129 = vmatpush1.msra.mxu0 %v2103
        %2130 = vmatprep.subr.mxu0 0.0
        %2131 = vmatpush1.msra.mxu0 %v2104
        %2132 = vmatprep.subr.mxu0 0.0
        %2133 = vmatpush1.msra.mxu0 %v2105
        %2134 = vmatprep.subr.mxu0 0.0
        %2135 = vmatpush1.msra.mxu0 %v2106
        %2136 = vmatprep.subr.mxu0 0.0
        %2137 = vmatpush1.msra.mxu0 %v2107
        %2138 = vmatprep.subr.mxu0 0.0
        %2139 = vmatpush1.msra.mxu0 %v2108
        %2140 = vmatprep.subr.mxu0 0.0
        %2141 = vmatpush1.msra.mxu0 %v2109
        %2142 = vmatprep.subr.mxu0 0.0
        %2143 = vmatpush1.msra.mxu0 %v2110
        %2144 = vmatprep.subr.mxu0 0.0
        %2145 = vmatpush1.msra.mxu0 %v2111
        %2146 = vmatprep.subr.mxu0 0.0
        %2147 = vmatpush1.msra.mxu0 %v2112
        %2148 = vmatprep.subr.mxu0 0.0
        %2149 = vmatpush1.msra.mxu0 %v2113
        %2150 = vmatprep.subr.mxu0 0.0
        %2151 = vmatpush1.msra.mxu0 %v2114
        %2152 = vmatprep.subr.mxu0 0.0
        %2153 = vmatpush1.msra.mxu0 %v2115
        %2154 = vmatprep.subr.mxu0 0.0
        %2155 = vmatpush1.msra.mxu0 %v2116
        %2156 = vmatprep.subr.mxu0 0.0
        %2157 = vmatpush1.msra.mxu0 0.0
        %2158 = vmatprep.subr.mxu0 0.0
        %2159 = vmatpush1.msra.mxu0 0.0
        %2160 = vmatprep.subr.mxu0 0.0
        %2161 = vmatpush1.msra.mxu0 0.0
        %2162 = vmatprep.subr.mxu0 0.0
        %2163 = vmatpush1.msra.mxu0 0.0
        %2164 = vmatprep.subr.mxu0 0.0
        %2165 = vmatpush1.msra.mxu0 0.0
        %2166 = vmatprep.subr.mxu0 0.0
        %2167 = vmatpush1.msra.mxu0 0.0
        %2168 = vmatprep.subr.mxu0 0.0
        %2169 = vmatpush1.msra.mxu0 0.0
        %2170 = vmatprep.subr.mxu0 0.0
        %2171 = vmatpush1.msra.mxu0 0.0
        %2172 = vmatprep.subr.mxu0 0.0
        %2173 = vmatpush1.msra.mxu0 0.0
        %2174 = vmatprep.subr.mxu0 0.0
        %2175 = vmatpush1.msra.mxu0 0.0
        %2176 = vmatprep.subr.mxu0 0.0
        %2177 = vmatpush1.msra.mxu0 0.0
        %2178 = vmatprep.subr.mxu0 0.0
        %2179 = vmatpush1.msra.mxu0 0.0
        %2180 = vmatprep.subr.mxu0 0.0
        %2181 = vmatpush1.msra.mxu0 0.0
        %2182 = vmatprep.subr.mxu0 0.0
        %2183 = vmatpush1.msra.mxu0 0.0
        %2184 = vmatprep.subr.mxu0 0.0
        %2185 = vmatpush1.msra.mxu0 0.0
        %2186 = vmatprep.subr.mxu0 0.0
        %2187 = vmatpush1.msra.mxu0 0.0
        %2188 = vmatprep.mubr.f32.mxu0 0.0
        %2189 = vmatmul.mubr.f32.gmra.mrb[0].mxu0 %v2098
        %v2190 = vpop.f32.mrb[0].mxu0
        %v2191 = vadd.f32 %v2122, %v2190
        %v2192 = vpop.f32.mrb[0].mxu0
        %2193 = vdwg.mxu0
        %2194 = vst [vmem:[%s479] sm:$0xf] %v2191
        %s2195 = sand.u32 %s254, 1
        %s2196 = scalar_lea.sflag [#allocation4], %s2195
        %s2197 = sand.u32 %s254, 1
        %s2198 = smul.addr %s2197, 4
        %s2199 = scalar_lea.vmem [#allocation16], %s2198
        // Predicated region
        $region93: #{tpu_custom_call.1} parent=59 // pred_check
          %p2200 = pneg %p264
        $region94: #{tpu_custom_call.1} parent=59 // pred_check_branch
          %2202 = sbr.rel (%p2200) target = $region96
        $region95: #{tpu_custom_call.1} parent=59 // pred_region
          %s2204 = ssub.s32 64, 64
          %2205 = vsyncadd %s2196, %s2204
          %s2206 = smul.addr %s31, 64
          %s2207 = scalar_lea.hbm %s10, %s2206
          %s2209 = sshll.u32 %s2199, 4
          %s2210 = int_to_ptr.vmem [resolvable:$true] %s2209
          %2212 = dma.vmem_to_hbm [thread:$0]  %s2210, 64, %s2207, %s2196
        $region96: #{tpu_custom_call.1} parent=59 // pred_fallthru
          _
      $region60: #{tpu_custom_call.1} parent=5 // pred_fallthru
        _
      %p2213 = scmp.le.s32.totalorder 2, %s26
      // Predicated region
      $region97: #{tpu_custom_call.1} parent=5 // pred_check
        %p2214 = pneg %p2213
      $region98: #{tpu_custom_call.1} parent=5 // pred_check_branch
        %2216 = sbr.rel (%p2214) target = $region100
      $region99: #{tpu_custom_call.1} parent=5 // pred_region
        %s2217 = ssub.s32 %s26, 2
        // Predicated region
        $region101: #{tpu_custom_call.1} parent=99 // pred_check
          %p2218 = pneg %p270
        $region102: #{tpu_custom_call.1} parent=99 // pred_check_branch
          %2220 = sbr.rel (%p2218) target = $region104
        $region103: #{tpu_custom_call.1} parent=99 // pred_region
          %s2221 = sand.u32 %s255, 1
          %s2222 = scalar_lea.sflag [#allocation4], %s2221
          %s2223 = sand.u32 %s255, 1
          %s2224 = smul.addr %s2223, 4
          %s2225 = scalar_lea.vmem [#allocation16], %s2224
          %2226 = dma.done %s2222, 64
        $region104: #{tpu_custom_call.1} parent=99 // pred_fallthru
          _
      $region100: #{tpu_custom_call.1} parent=5 // pred_fallthru
        _
    $region6: #{tpu_custom_call.1} parent=1 // loop_footer
      %s30 = sadd.s32 1, %s26
    $region7: #{tpu_custom_call.1} parent=1 // loop_footer_branch
      %25 = sbr.rel target = $region3
    $region8: #{tpu_custom_call.1} parent=1 // loop_exit
      _
    %2227 = vsyncpa [#allocation3], 1
    %s2228 = scalar_lea.sflag [#allocation3], 1
    %2229 = vsyncpa %s2228, 1
    %2230 = vsyncpa [#allocation6], 1
    %2231 = vsyncpa [#allocation9], 1
    %2232 = vsyncpa [#allocation12], 1
    %2233 = vsyncpa [#allocation15], 1
    %2234 = vsyncpa [#allocation4], 1
    %s2235 = scalar_lea.sflag [#allocation4], 1
    %2236 = vsyncpa %s2235, 1

</llo_original>
